<compile_context>
chip_gen: v7x
topology: tpu7x:2x2x1
jax: 0.10.0
libtpu: 0.0.40
codegen_flags: <defaults>
</compile_context>

<pallas_src>
import functools
import numpy as np

import jax
import jax.numpy as jnp
from jax.experimental import pallas as pl
from jax.experimental.pallas import tpu as pltpu


_LANE = 128  # gt-axis padding bucket (lane width)


# --------------------------------------------------------------------------
# Pallas kernel: pairwise matching cost + pairwise IoU for one batch element.
# Refs (batch dim squeezed away by the BlockSpec):
#   logits_ref    : (Nq, C)       f32
#   boxes_ref     : (Nq, 4)       f32  xyxy
#   tgt_ids_ref   : (1, NG_PAD)   i32  (pad lanes = -1)
#   gt_t_ref      : (4, NG_PAD)   f32  gt boxes xyxy, transposed (coords on sublanes)
#   img_size_ref  : (1, 4)        f32
#   img_tgt_t_ref : (4, NG_PAD)   f32  per-gt image size xyxy, transposed (pad = 1)
# Outputs: cost (Nq, NG_PAD) f32, iou (Nq, NG_PAD) f32  (pad lanes masked).
# --------------------------------------------------------------------------
def _matcher_cost_kernel(logits_ref, boxes_ref, tgt_ids_ref, gt_t_ref,
                         img_size_ref, img_tgt_t_ref,
                         cost_ref, iou_ref,
                         *, cost_class_w, cost_bbox_w, cost_giou_w):
    ncls = logits_ref.shape[-1]
    ng = tgt_ids_ref.shape[-1]

    # ---- out_prob = softmax(pred_logits, -1)  (use_focal=False path) ----
    logits = logits_ref[...]                                     # (Nq, C)
    m = jnp.max(logits, axis=-1, keepdims=True)
    e = jnp.exp(logits - m)
    prob = e / jnp.sum(e, axis=-1, keepdims=True)                # (Nq, C)

    # ---- cost_class = -out_prob[:, tgt_ids]  via one-hot matmul (lane-dense) ----
    tgt_ids = tgt_ids_ref[...]                                   # (1, NG_PAD) int32
    gt_valid = tgt_ids >= 0                                      # (1, NG_PAD) bool
    onehot = (jax.lax.broadcasted_iota(jnp.int32, (ncls, ng), 0) ==
              tgt_ids).astype(jnp.float32)                       # (C, NG_PAD); pad cols = 0
    cost_class = -jnp.dot(prob, onehot, preferred_element_type=jnp.float32)

    # ---- unpack box coordinates ----
    boxes = boxes_ref[...]                                       # (Nq, 4) xyxy
    bx1 = boxes[:, 0:1]; by1 = boxes[:, 1:2]
    bx2 = boxes[:, 2:3]; by2 = boxes[:, 3:4]                     # (Nq, 1)

    gt_t = gt_t_ref[...]                                         # (4, NG_PAD) xyxy
    gx1 = gt_t[0:1, :]; gy1 = gt_t[1:2, :]
    gx2 = gt_t[2:3, :]; gy2 = gt_t[3:4, :]                       # (1, NG_PAD)

    # ---- cost_bbox: pairwise L1 (cdist p=1) on normalized boxes ----
    boxes_n = boxes / img_size_ref[...]                          # (Nq, 4)
    gt_n_t = gt_t / img_tgt_t_ref[...]                           # (4, NG_PAD)
    cost_bbox = (jnp.abs(boxes_n[:, 0:1] - gt_n_t[0:1, :]) +
                 jnp.abs(boxes_n[:, 1:2] - gt_n_t[1:2, :]) +
                 jnp.abs(boxes_n[:, 2:3] - gt_n_t[2:3, :]) +
                 jnp.abs(boxes_n[:, 3:4] - gt_n_t[3:4, :]))      # (Nq, NG_PAD)

    # ---- pairwise IoU / GIoU (no eps, matching torchvision/DETR reference) ----
    area_p = (bx2 - bx1) * (by2 - by1)                           # (Nq, 1)
    area_g = (gx2 - gx1) * (gy2 - gy1)                           # (1, NG_PAD)
    iw = jnp.maximum(jnp.minimum(bx2, gx2) - jnp.maximum(bx1, gx1), 0.0)
    ih = jnp.maximum(jnp.minimum(by2, gy2) - jnp.maximum(by1, gy1), 0.0)
    inter = iw * ih                                              # (Nq, NG_PAD)
    union = area_p + area_g - inter
    iou = inter / union

    enc_w = jnp.maximum(jnp.maximum(bx2, gx2) - jnp.minimum(bx1, gx1), 0.0)
    enc_h = jnp.maximum(jnp.maximum(by2, gy2) - jnp.minimum(by1, gy1), 0.0)
    area_c = enc_w * enc_h
    giou = iou - (area_c - union) / area_c
    cost_giou = -giou

    # ---- get_in_boxes_info (expanded_strides unused in the reference) ----
    # NOTE: the reference's cxcywh->xyxy roundtrip reproduces gx1..gy2 up to f32
    # rounding and only feeds strict inequalities, so it is elided here.
    acx = (bx1 + bx2) * 0.5; acy = (by1 + by2) * 0.5             # anchor centers (Nq,1)
    gcx = (gx1 + gx2) * 0.5; gcy = (gy1 + gy2) * 0.5             # gt centers (1,NG_PAD)
    gw = gx2 - gx1; gh = gy2 - gy1

    in_boxes = ((acx > gx1) & (acx < gx2) &
                (acy > gy1) & (acy < gy2)) & gt_valid            # (Nq, NG_PAD)
    r = 2.5
    in_centers = ((acx > gcx - r * gw) & (acx < gcx + r * gw) &
                  (acy > gcy - r * gh) & (acy < gcy + r * gh)) & gt_valid

    in_boxes_all = jnp.sum(in_boxes.astype(jnp.float32), axis=-1,
                           keepdims=True) > 0.0                  # (Nq, 1)
    in_centers_all = jnp.sum(in_centers.astype(jnp.float32), axis=-1,
                             keepdims=True) > 0.0                # (Nq, 1)
    fg_mask = in_boxes_all | in_centers_all                      # (Nq, 1)
    in_boxes_and_center = in_boxes & in_centers                  # (Nq, NG_PAD)

    # ---- compose the final cost matrix ----
    cost = (cost_bbox_w * cost_bbox + cost_class_w * cost_class +
            cost_giou_w * cost_giou +
            100.0 * (1.0 - in_boxes_and_center.astype(jnp.float32)))
    cost = cost + 10000.0 * (1.0 - fg_mask.astype(jnp.float32))  # cost[~fg] += 1e4

    # ---- mask padded gt lanes (host slices to the real Ng anyway) ----
    cost_ref[...] = jnp.where(gt_valid, cost, jnp.float32(1e30))
    iou_ref[...] = jnp.where(gt_valid, iou, jnp.float32(0.0))


# --------------------------------------------------------------------------
# Cached pallas_call builder (one compile per (B, Nq, C, NG_PAD, weights)).
# --------------------------------------------------------------------------
@functools.lru_cache(maxsize=None)
def _build_matcher_call(bs, nq, ncls, ng_pad, cost_class_w, cost_bbox_w, cost_giou_w):
    kernel = functools.partial(_matcher_cost_kernel,
                               cost_class_w=cost_class_w,
                               cost_bbox_w=cost_bbox_w,
                               cost_giou_w=cost_giou_w)
    bmap = lambda b: (b, 0, 0)
    call = pl.pallas_call(
        kernel,
        out_shape=(jax.ShapeDtypeStruct((bs, nq, ng_pad), jnp.float32),
                   jax.ShapeDtypeStruct((bs, nq, ng_pad), jnp.float32)),
        grid=(bs,),
        in_specs=[
            pl.BlockSpec((None, nq, ncls), bmap),     # pred_logits
            pl.BlockSpec((None, nq, 4), bmap),        # pred_boxes (xyxy)
            pl.BlockSpec((None, 1, ng_pad), bmap),    # tgt ids (pad = -1)
            pl.BlockSpec((None, 4, ng_pad), bmap),    # gt boxes xyxy^T
            pl.BlockSpec((None, 1, 4), bmap),         # image_size_xyxy
            pl.BlockSpec((None, 4, ng_pad), bmap),    # image_size_xyxy_tgt^T
        ],
        out_specs=(pl.BlockSpec((None, nq, ng_pad), bmap),
                   pl.BlockSpec((None, nq, ng_pad), bmap)),
        compiler_params=pltpu.CompilerParams(
            dimension_semantics=("parallel",)),       # v7x: batch across both TCs
    )
    return jax.jit(call)


def _batched_pairwise_cost_and_iou(pred_logits, pred_boxes, targets,
                                   cost_class=1.0, cost_bbox=1.0, cost_giou=1.0):
    """One Pallas launch for the whole batch; Ng padded to a 128-lane bucket.

    Returns device arrays (cost, iou) of shape (B, Nq, NG_PAD) and the per-batch
    real gt counts.
    """
    pred_logits = jnp.asarray(pred_logits, jnp.float32)
    pred_boxes = jnp.asarray(pred_boxes, jnp.float32)
    bs, nq, ncls = pred_logits.shape

    num_gts = [int(np.asarray(t["labels"]).shape[0]) for t in targets]
    max_ng = max(num_gts) if num_gts else 0
    ng_pad = max(_LANE, -(-max_ng // _LANE) * _LANE)

    tgt_ids_p = np.full((bs, 1, ng_pad), -1, dtype=np.int32)
    gt_boxes_t = np.zeros((bs, 4, ng_pad), dtype=np.float32)
    img_size = np.ones((bs, 1, 4), dtype=np.float32)
    img_tgt_t = np.ones((bs, 4, ng_pad), dtype=np.float32)   # pad = 1 (avoid 0/0)
    for b, t in enumerate(targets):
        img_size[b, 0, :] = np.asarray(t["image_size_xyxy"], dtype=np.float32).reshape(4)
        ng = num_gts[b]
        if ng == 0:
            continue
        tgt_ids_p[b, 0, :ng] = np.asarray(t["labels"], dtype=np.int32).reshape(ng)
        gt_boxes_t[b, :, :ng] = np.asarray(t["boxes_xyxy"], dtype=np.float32).reshape(ng, 4).T
        img_tgt_t[b, :, :ng] = np.asarray(t["image_size_xyxy_tgt"],
                                          dtype=np.float32).reshape(ng, 4).T

    call = _build_matcher_call(bs, nq, ncls, ng_pad,
                               float(cost_class), float(cost_bbox), float(cost_giou))
    cost, iou = call(pred_logits, pred_boxes,
                     jnp.asarray(tgt_ids_p), jnp.asarray(gt_boxes_t),
                     jnp.asarray(img_size), jnp.asarray(img_tgt_t))
    return cost, iou, num_gts


# --------------------------------------------------------------------------
# Host-side dynamic-k matching (data-dependent control flow; exact semantics).
# --------------------------------------------------------------------------
def _dynamic_k_matching_np(cost, pair_wise_ious, num_gt, ota_k):
    cost = np.array(cost, dtype=np.float32, copy=True)
    ious = np.array(pair_wise_ious, dtype=np.float32)
    matching_matrix = np.zeros_like(cost)

    n_candidate_k = min(ota_k, ious.shape[0])
    topk_ious = np.sort(ious, axis=0)[::-1][:n_candidate_k]          # top-k along queries
    dynamic_ks = np.clip(topk_ious.sum(0).astype(np.int32), 1, None)

    for gt_idx in range(num_gt):
        k = int(dynamic_ks[gt_idx])
        pos_idx = np.argsort(cost[:, gt_idx], kind="stable")[:k]     # smallest-cost queries
        matching_matrix[pos_idx, gt_idx] = 1.0

    anchor_matching_gt = matching_matrix.sum(1)
    if (anchor_matching_gt > 1).sum() > 0:
        cost_argmin = np.argmin(cost[anchor_matching_gt > 1], axis=1)
        matching_matrix[anchor_matching_gt > 1] *= 0
        matching_matrix[anchor_matching_gt > 1, cost_argmin] = 1

    while (matching_matrix.sum(0) == 0).any():
        matched_query_id = matching_matrix.sum(1) > 0
        cost[matched_query_id] += 100000.0
        unmatch_id = np.nonzero(matching_matrix.sum(0) == 0)[0]
        for gt_idx in unmatch_id:
            pos_idx = np.argmin(cost[:, gt_idx])
            matching_matrix[pos_idx, gt_idx] = 1.0
        if (matching_matrix.sum(1) > 1).sum() > 0:
            # NOTE: reuses the pre-loop anchor_matching_gt, matching the reference.
            cost_argmin = np.argmin(cost[anchor_matching_gt > 1], axis=1)
            matching_matrix[anchor_matching_gt > 1] *= 0
            matching_matrix[anchor_matching_gt > 1, cost_argmin] = 1

    assert not (matching_matrix.sum(0) == 0).any()
    selected_query = matching_matrix.sum(1) > 0
    gt_indices = matching_matrix[selected_query].argmax(1)
    assert selected_query.sum() == len(gt_indices)

    cost[matching_matrix == 0] = np.inf
    matched_query_id = np.argmin(cost, axis=0)
    return (selected_query, gt_indices), matched_query_id


# --------------------------------------------------------------------------
# Module wrapper (mirrors HungarianMatcherDynamicK.forward).
# --------------------------------------------------------------------------
class HungarianMatcherDynamicK:
    def __init__(self, cost_class=1.0, cost_bbox=1.0, cost_giou=1.0,
                 cost_mask=1.0, use_focal=False, use_fed_loss=False, ota_k=5):
        self.cost_class = cost_class
        self.cost_bbox = cost_bbox
        self.cost_giou = cost_giou
        self.ota_k = ota_k
        self.use_focal = use_focal
        self.use_fed_loss = use_fed_loss
        assert cost_class != 0 or cost_bbox != 0 or cost_giou != 0, "all costs cant be 0"
        # TODO(synk): focal / fed-loss classification-cost variants are not wired into
        # the kernel; only the default softmax path (use_focal=False) is implemented.
        assert not use_focal and not use_fed_loss

    def __call__(self, outputs, targets):
        pred_logits = outputs["pred_logits"]
        pred_boxes = outputs["pred_boxes"]
        bs, num_queries = pred_logits.shape[:2]
        assert bs == len(targets)

        num_gts = [int(np.asarray(t["labels"]).shape[0]) for t in targets]

        def _empty():
            return ((np.zeros((num_queries,), dtype=bool),
                     np.zeros((0,), dtype=np.int64)),
                    np.zeros((0,), dtype=np.int64))

        indices, matched_ids = [], []
        if max(num_gts, default=0) == 0:
            for _ in range(bs):
                idx, mq = _empty()
                indices.append(idx)
                matched_ids.append(mq)
            return indices, matched_ids

        # One device launch + one blocking D2H copy for the whole batch.
        cost_d, iou_d, _ = _batched_pairwise_cost_and_iou(
            pred_logits, pred_boxes, targets,
            self.cost_class, self.cost_bbox, self.cost_giou)
        cost_d, iou_d = jax.block_until_ready((cost_d, iou_d))
        cost_all = np.asarray(cost_d)
        iou_all = np.asarray(iou_d)

        for b in range(bs):
            ng = num_gts[b]
            if ng == 0:
                idx, mq = _empty()
                indices.append(idx)
                matched_ids.append(mq)
                continue
            num_gt = int(np.asarray(targets[b]["boxes"]).shape[0])
            (sel, gt_idx), mqid = _dynamic_k_matching_np(
                cost_all[b, :, :ng], iou_all[b, :, :ng], num_gt, self.ota_k)
            indices.append((sel, gt_idx))
            matched_ids.append(mqid)
        return indices, matched_ids


# --------------------------------------------------------------------------
# Demo / smoke test.
# --------------------------------------------------------------------------
def _rand_boxes_xyxy(key, n, W, H):
    kx, ky = jax.random.split(key)
    xs = jnp.sort(jax.random.uniform(kx, (n, 2), minval=0.0, maxval=W), axis=1)
    ys = jnp.sort(jax.random.uniform(ky, (n, 2), minval=0.0, maxval=H), axis=1)
    return jnp.stack([xs[:, 0], ys[:, 0], xs[:, 1], ys[:, 1]], axis=1)


def _xyxy_to_cxcywh(b):
    x1, y1, x2, y2 = b[:, 0], b[:, 1], b[:, 2], b[:, 3]
    return jnp.stack([(x1 + x2) / 2, (y1 + y2) / 2, x2 - x1, y2 - y1], axis=1)


if __name__ == "__main__":
    key = jax.random.PRNGKey(0)
    bs, num_queries, num_classes = 2, 32, 16
    W, H = 64.0, 64.0
    num_gts = [3, 5]

    k_logits, k_boxes, *k_tgts = jax.random.split(key, 2 + 2 * bs)
    pred_logits = jax.random.normal(k_logits, (bs, num_queries, num_classes),
                                    dtype=jnp.float32)
    pred_boxes = jnp.stack(
        [_rand_boxes_xyxy(jax.random.fold_in(k_boxes, b), num_queries, W, H)
         for b in range(bs)], axis=0)

    img_size_xyxy = jnp.array([W, H, W, H], dtype=jnp.float32)
    targets = []
    for b in range(bs):
        ng = num_gts[b]
        gt_xyxy = _rand_boxes_xyxy(k_tgts[2 * b], ng, W, H)
        labels = jax.random.randint(k_tgts[2 * b + 1], (ng,), 0, num_classes)
        targets.append({
            "labels": labels,
            "boxes": _xyxy_to_cxcywh(gt_xyxy),            # only shape[0] is used
            "boxes_xyxy": gt_xyxy,
            "image_size_xyxy": img_size_xyxy,
            "image_size_xyxy_tgt": jnp.tile(img_size_xyxy[None, :], (ng, 1)),
        })

    # Run the batched Pallas kernel once directly and block on its result.
    cost0, iou0, _ = _batched_pairwise_cost_and_iou(
        pred_logits, pred_boxes, targets, 2.0, 5.0, 2.0)
    jax.block_until_ready((cost0, iou0))
    assert cost0.shape == (bs, num_queries, _LANE)
    assert bool(jnp.isfinite(cost0[:, :, :max(num_gts)]).all())

    matcher = HungarianMatcherDynamicK(cost_class=2.0, cost_bbox=5.0,
                                       cost_giou=2.0, ota_k=5)
    indices, matched_ids = matcher({"pred_logits": pred_logits,
                                    "pred_boxes": pred_boxes}, targets)

    # Basic sanity: every gt got at least one query, matched ids are in range.
    for b in range(bs):
        sel, gt_idx = indices[b]
        assert sel.shape == (num_queries,)
        assert sel.sum() == len(gt_idx)
        assert matched_ids[b].shape == (num_gts[b],)
        assert (matched_ids[b] >= 0).all() and (matched_ids[b] < num_queries).all()

    print("KERNEL_OK")
</pallas_src>

<mosaic_0001>
module attributes {stable_mosaic.version = 11 : i64} {
  func.func @_matcher_cost_kernel(%arg0: i32, %arg1: memref<1x32x16xf32, #tpu.memory_space<vmem>>, %arg2: memref<1x32x4xf32, #tpu.memory_space<vmem>>, %arg3: memref<1x1x128xi32, #tpu.memory_space<vmem>>, %arg4: memref<1x4x128xf32, #tpu.memory_space<vmem>>, %arg5: memref<1x1x4xf32, #tpu.memory_space<vmem>>, %arg6: memref<1x4x128xf32, #tpu.memory_space<vmem>>, %arg7: memref<1x32x128xf32, #tpu.memory_space<vmem>>, %arg8: memref<1x32x128xf32, #tpu.memory_space<vmem>>) attributes {dimension_semantics = [#tpu.dimension_semantics<parallel>], iteration_bounds = array<i64: 2>, scalar_prefetch = 0 : i64, scratch_operands = 0 : i64, tpu.core_type = #tpu.core_type<tc>, window_params = [{transform_indices = @transform_0, window_bounds = array<i64: 1, 32, 16>}, {transform_indices = @transform_1, window_bounds = array<i64: 1, 32, 4>}, {transform_indices = @transform_2, window_bounds = array<i64: 1, 1, 128>}, {transform_indices = @transform_3, window_bounds = array<i64: 1, 4, 128>}, {transform_indices = @transform_4, window_bounds = array<i64: 1, 1, 4>}, {transform_indices = @transform_5, window_bounds = array<i64: 1, 4, 128>}, {transform_indices = @transform_6, window_bounds = array<i64: 1, 32, 128>}, {transform_indices = @transform_7, window_bounds = array<i64: 1, 32, 128>}]} {
    %c0 = arith.constant 0 : index
    %c0_0 = arith.constant 0 : index
    %c0_1 = arith.constant 0 : index
    %0 = vector.load %arg1[%c0, %c0_0, %c0_1] : memref<1x32x16xf32, #tpu.memory_space<vmem>>, vector<1x32x16xf32>
    %1 = vector.shape_cast %0 : vector<1x32x16xf32> to vector<32x16xf32>
    %cst = arith.constant dense<0xFF800000> : vector<32xf32>
    %2 = vector.multi_reduction <maximumf>, %1, %cst [1] : vector<32x16xf32> to vector<32xf32>
    %3 = vector.shape_cast %2 : vector<32xf32> to vector<32x1xf32>
    %4 = vector.broadcast %3 : vector<32x1xf32> to vector<32x16xf32>
    %5 = arith.subf %1, %4 : vector<32x16xf32>
    %6 = math.exp %5 : vector<32x16xf32>
    %cst_2 = arith.constant dense<0.000000e+00> : vector<32xf32>
    %7 = vector.multi_reduction <add>, %6, %cst_2 [1] : vector<32x16xf32> to vector<32xf32>
    %8 = vector.shape_cast %7 : vector<32xf32> to vector<32x1xf32>
    %9 = vector.broadcast %8 : vector<32x1xf32> to vector<32x16xf32>
    %10 = arith.divf %6, %9 : vector<32x16xf32>
    %c0_3 = arith.constant 0 : index
    %c0_4 = arith.constant 0 : index
    %c0_5 = arith.constant 0 : index
    %11 = vector.load %arg3[%c0_3, %c0_4, %c0_5] : memref<1x1x128xi32, #tpu.memory_space<vmem>>, vector<1x1x128xi32>
    %12 = vector.shape_cast %11 : vector<1x1x128xi32> to vector<1x128xi32>
    %c0_i32 = arith.constant 0 : i32
    %13 = vector.broadcast %c0_i32 : i32 to vector<1x128xi32>
    %14 = arith.cmpi sge, %12, %13 : vector<1x128xi32>
    %15 = tpu.iota {dimensions = array<i32: 0>} : vector<16x128xi32>
    %16 = vector.broadcast %12 : vector<1x128xi32> to vector<16x128xi32>
    %17 = arith.cmpi eq, %15, %16 : vector<16x128xi32>
    %18 = arith.extui %17 : vector<16x128xi1> to vector<16x128xi32>
    %19 = arith.sitofp %18 : vector<16x128xi32> to vector<16x128xf32>
    %cst_6 = arith.constant dense<0.000000e+00> : vector<32x128xf32>
    %20 = tpu.matmul %10, %19, %cst_6 {dimension_numbers = #tpu.dot_dimension_numbers<[1], [0], [0], [1], [0, 0, 1, 1], [], []>} : vector<32x16xf32>, vector<16x128xf32>, vector<32x128xf32> -> vector<32x128xf32>
    %cst_7 = arith.constant 0.000000e+00 : f32
    %21 = vector.broadcast %cst_7 : f32 to vector<32x128xf32>
    %22 = arith.subf %21, %20 : vector<32x128xf32>
    %c0_8 = arith.constant 0 : index
    %c0_9 = arith.constant 0 : index
    %c0_10 = arith.constant 0 : index
    %23 = vector.load %arg2[%c0_8, %c0_9, %c0_10] : memref<1x32x4xf32, #tpu.memory_space<vmem>>, vector<1x32x4xf32>
    %24 = vector.shape_cast %23 : vector<1x32x4xf32> to vector<32x4xf32>
    %25 = vector.extract_strided_slice %24 {offsets = [0, 0], sizes = [32, 1], strides = [1, 1]} : vector<32x4xf32> to vector<32x1xf32>
    %26 = vector.extract_strided_slice %24 {offsets = [0, 1], sizes = [32, 1], strides = [1, 1]} : vector<32x4xf32> to vector<32x1xf32>
    %27 = vector.extract_strided_slice %24 {offsets = [0, 2], sizes = [32, 1], strides = [1, 1]} : vector<32x4xf32> to vector<32x1xf32>
    %28 = vector.extract_strided_slice %24 {offsets = [0, 3], sizes = [32, 1], strides = [1, 1]} : vector<32x4xf32> to vector<32x1xf32>
    %c0_11 = arith.constant 0 : index
    %c0_12 = arith.constant 0 : index
    %c0_13 = arith.constant 0 : index
    %29 = vector.load %arg4[%c0_11, %c0_12, %c0_13] : memref<1x4x128xf32, #tpu.memory_space<vmem>>, vector<1x4x128xf32>
    %30 = vector.shape_cast %29 : vector<1x4x128xf32> to vector<4x128xf32>
    %31 = vector.extract_strided_slice %30 {offsets = [0, 0], sizes = [1, 128], strides = [1, 1]} : vector<4x128xf32> to vector<1x128xf32>
    %32 = vector.extract_strided_slice %30 {offsets = [1, 0], sizes = [1, 128], strides = [1, 1]} : vector<4x128xf32> to vector<1x128xf32>
    %33 = vector.extract_strided_slice %30 {offsets = [2, 0], sizes = [1, 128], strides = [1, 1]} : vector<4x128xf32> to vector<1x128xf32>
    %34 = vector.extract_strided_slice %30 {offsets = [3, 0], sizes = [1, 128], strides = [1, 1]} : vector<4x128xf32> to vector<1x128xf32>
    %c0_14 = arith.constant 0 : index
    %c0_15 = arith.constant 0 : index
    %c0_16 = arith.constant 0 : index
    %35 = vector.load %arg5[%c0_14, %c0_15, %c0_16] : memref<1x1x4xf32, #tpu.memory_space<vmem>>, vector<1x1x4xf32>
    %36 = vector.shape_cast %35 : vector<1x1x4xf32> to vector<1x4xf32>
    %37 = vector.broadcast %36 : vector<1x4xf32> to vector<32x4xf32>
    %38 = arith.divf %24, %37 : vector<32x4xf32>
    %c0_17 = arith.constant 0 : index
    %c0_18 = arith.constant 0 : index
    %c0_19 = arith.constant 0 : index
    %39 = vector.load %arg6[%c0_17, %c0_18, %c0_19] : memref<1x4x128xf32, #tpu.memory_space<vmem>>, vector<1x4x128xf32>
    %40 = vector.shape_cast %39 : vector<1x4x128xf32> to vector<4x128xf32>
    %41 = arith.divf %30, %40 : vector<4x128xf32>
    %42 = vector.extract_strided_slice %38 {offsets = [0, 0], sizes = [32, 1], strides = [1, 1]} : vector<32x4xf32> to vector<32x1xf32>
    %43 = vector.extract_strided_slice %41 {offsets = [0, 0], sizes = [1, 128], strides = [1, 1]} : vector<4x128xf32> to vector<1x128xf32>
    %44 = vector.broadcast %42 : vector<32x1xf32> to vector<32x128xf32>
    %45 = vector.broadcast %43 : vector<1x128xf32> to vector<32x128xf32>
    %46 = arith.subf %44, %45 : vector<32x128xf32>
    %47 = math.absf %46 : vector<32x128xf32>
    %48 = vector.extract_strided_slice %38 {offsets = [0, 1], sizes = [32, 1], strides = [1, 1]} : vector<32x4xf32> to vector<32x1xf32>
    %49 = vector.extract_strided_slice %41 {offsets = [1, 0], sizes = [1, 128], strides = [1, 1]} : vector<4x128xf32> to vector<1x128xf32>
    %50 = vector.broadcast %48 : vector<32x1xf32> to vector<32x128xf32>
    %51 = vector.broadcast %49 : vector<1x128xf32> to vector<32x128xf32>
    %52 = arith.subf %50, %51 : vector<32x128xf32>
    %53 = math.absf %52 : vector<32x128xf32>
    %54 = arith.addf %47, %53 : vector<32x128xf32>
    %55 = vector.extract_strided_slice %38 {offsets = [0, 2], sizes = [32, 1], strides = [1, 1]} : vector<32x4xf32> to vector<32x1xf32>
    %56 = vector.extract_strided_slice %41 {offsets = [2, 0], sizes = [1, 128], strides = [1, 1]} : vector<4x128xf32> to vector<1x128xf32>
    %57 = vector.broadcast %55 : vector<32x1xf32> to vector<32x128xf32>
    %58 = vector.broadcast %56 : vector<1x128xf32> to vector<32x128xf32>
    %59 = arith.subf %57, %58 : vector<32x128xf32>
    %60 = math.absf %59 : vector<32x128xf32>
    %61 = arith.addf %54, %60 : vector<32x128xf32>
    %62 = vector.extract_strided_slice %38 {offsets = [0, 3], sizes = [32, 1], strides = [1, 1]} : vector<32x4xf32> to vector<32x1xf32>
    %63 = vector.extract_strided_slice %41 {offsets = [3, 0], sizes = [1, 128], strides = [1, 1]} : vector<4x128xf32> to vector<1x128xf32>
    %64 = vector.broadcast %62 : vector<32x1xf32> to vector<32x128xf32>
    %65 = vector.broadcast %63 : vector<1x128xf32> to vector<32x128xf32>
    %66 = arith.subf %64, %65 : vector<32x128xf32>
    %67 = math.absf %66 : vector<32x128xf32>
    %68 = arith.addf %61, %67 : vector<32x128xf32>
    %69 = arith.subf %27, %25 : vector<32x1xf32>
    %70 = arith.subf %28, %26 : vector<32x1xf32>
    %71 = arith.mulf %69, %70 : vector<32x1xf32>
    %72 = arith.subf %33, %31 : vector<1x128xf32>
    %73 = arith.subf %34, %32 : vector<1x128xf32>
    %74 = arith.mulf %72, %73 : vector<1x128xf32>
    %75 = vector.broadcast %27 : vector<32x1xf32> to vector<32x128xf32>
    %76 = vector.broadcast %33 : vector<1x128xf32> to vector<32x128xf32>
    %77 = arith.minimumf %75, %76 : vector<32x128xf32>
    %78 = vector.broadcast %25 : vector<32x1xf32> to vector<32x128xf32>
    %79 = vector.broadcast %31 : vector<1x128xf32> to vector<32x128xf32>
    %80 = arith.maximumf %78, %79 : vector<32x128xf32>
    %81 = arith.subf %77, %80 : vector<32x128xf32>
    %cst_20 = arith.constant 0.000000e+00 : f32
    %82 = vector.broadcast %cst_20 : f32 to vector<32x128xf32>
    %83 = arith.maximumf %81, %82 : vector<32x128xf32>
    %84 = vector.broadcast %28 : vector<32x1xf32> to vector<32x128xf32>
    %85 = vector.broadcast %34 : vector<1x128xf32> to vector<32x128xf32>
    %86 = arith.minimumf %84, %85 : vector<32x128xf32>
    %87 = vector.broadcast %26 : vector<32x1xf32> to vector<32x128xf32>
    %88 = vector.broadcast %32 : vector<1x128xf32> to vector<32x128xf32>
    %89 = arith.maximumf %87, %88 : vector<32x128xf32>
    %90 = arith.subf %86, %89 : vector<32x128xf32>
    %cst_21 = arith.constant 0.000000e+00 : f32
    %91 = vector.broadcast %cst_21 : f32 to vector<32x128xf32>
    %92 = arith.maximumf %90, %91 : vector<32x128xf32>
    %93 = arith.mulf %83, %92 : vector<32x128xf32>
    %94 = vector.broadcast %71 : vector<32x1xf32> to vector<32x128xf32>
    %95 = vector.broadcast %74 : vector<1x128xf32> to vector<32x128xf32>
    %96 = arith.addf %94, %95 : vector<32x128xf32>
    %97 = arith.subf %96, %93 : vector<32x128xf32>
    %98 = arith.divf %93, %97 : vector<32x128xf32>
    %99 = vector.broadcast %27 : vector<32x1xf32> to vector<32x128xf32>
    %100 = vector.broadcast %33 : vector<1x128xf32> to vector<32x128xf32>
    %101 = arith.maximumf %99, %100 : vector<32x128xf32>
    %102 = vector.broadcast %25 : vector<32x1xf32> to vector<32x128xf32>
    %103 = vector.broadcast %31 : vector<1x128xf32> to vector<32x128xf32>
    %104 = arith.minimumf %102, %103 : vector<32x128xf32>
    %105 = arith.subf %101, %104 : vector<32x128xf32>
    %cst_22 = arith.constant 0.000000e+00 : f32
    %106 = vector.broadcast %cst_22 : f32 to vector<32x128xf32>
    %107 = arith.maximumf %105, %106 : vector<32x128xf32>
    %108 = vector.broadcast %28 : vector<32x1xf32> to vector<32x128xf32>
    %109 = vector.broadcast %34 : vector<1x128xf32> to vector<32x128xf32>
    %110 = arith.maximumf %108, %109 : vector<32x128xf32>
    %111 = vector.broadcast %26 : vector<32x1xf32> to vector<32x128xf32>
    %112 = vector.broadcast %32 : vector<1x128xf32> to vector<32x128xf32>
    %113 = arith.minimumf %111, %112 : vector<32x128xf32>
    %114 = arith.subf %110, %113 : vector<32x128xf32>
    %cst_23 = arith.constant 0.000000e+00 : f32
    %115 = vector.broadcast %cst_23 : f32 to vector<32x128xf32>
    %116 = arith.maximumf %114, %115 : vector<32x128xf32>
    %117 = arith.mulf %107, %116 : vector<32x128xf32>
    %118 = arith.subf %117, %97 : vector<32x128xf32>
    %119 = arith.divf %118, %117 : vector<32x128xf32>
    %120 = arith.subf %98, %119 : vector<32x128xf32>
    %cst_24 = arith.constant 0.000000e+00 : f32
    %121 = vector.broadcast %cst_24 : f32 to vector<32x128xf32>
    %122 = arith.subf %121, %120 : vector<32x128xf32>
    %123 = arith.addf %25, %27 : vector<32x1xf32>
    %cst_25 = arith.constant 5.000000e-01 : f32
    %124 = vector.broadcast %cst_25 : f32 to vector<32x1xf32>
    %125 = arith.mulf %123, %124 : vector<32x1xf32>
    %126 = arith.addf %26, %28 : vector<32x1xf32>
    %cst_26 = arith.constant 5.000000e-01 : f32
    %127 = vector.broadcast %cst_26 : f32 to vector<32x1xf32>
    %128 = arith.mulf %126, %127 : vector<32x1xf32>
    %129 = arith.addf %31, %33 : vector<1x128xf32>
    %cst_27 = arith.constant 5.000000e-01 : f32
    %130 = vector.broadcast %cst_27 : f32 to vector<1x128xf32>
    %131 = arith.mulf %129, %130 : vector<1x128xf32>
    %132 = arith.addf %32, %34 : vector<1x128xf32>
    %cst_28 = arith.constant 5.000000e-01 : f32
    %133 = vector.broadcast %cst_28 : f32 to vector<1x128xf32>
    %134 = arith.mulf %132, %133 : vector<1x128xf32>
    %135 = arith.subf %33, %31 : vector<1x128xf32>
    %136 = arith.subf %34, %32 : vector<1x128xf32>
    %137 = vector.broadcast %125 : vector<32x1xf32> to vector<32x128xf32>
    %138 = vector.broadcast %31 : vector<1x128xf32> to vector<32x128xf32>
    %139 = arith.cmpf ogt, %137, %138 : vector<32x128xf32>
    %140 = vector.broadcast %125 : vector<32x1xf32> to vector<32x128xf32>
    %141 = vector.broadcast %33 : vector<1x128xf32> to vector<32x128xf32>
    %142 = arith.cmpf olt, %140, %141 : vector<32x128xf32>
    %143 = arith.andi %139, %142 : vector<32x128xi1>
    %144 = vector.broadcast %128 : vector<32x1xf32> to vector<32x128xf32>
    %145 = vector.broadcast %32 : vector<1x128xf32> to vector<32x128xf32>
    %146 = arith.cmpf ogt, %144, %145 : vector<32x128xf32>
    %147 = arith.andi %143, %146 : vector<32x128xi1>
    %148 = vector.broadcast %128 : vector<32x1xf32> to vector<32x128xf32>
    %149 = vector.broadcast %34 : vector<1x128xf32> to vector<32x128xf32>
    %150 = arith.cmpf olt, %148, %149 : vector<32x128xf32>
    %151 = arith.andi %147, %150 : vector<32x128xi1>
    %152 = vector.broadcast %14 : vector<1x128xi1> to vector<32x128xi1>
    %153 = arith.andi %151, %152 : vector<32x128xi1>
    %cst_29 = arith.constant 2.500000e+00 : f32
    %154 = vector.broadcast %cst_29 : f32 to vector<1x128xf32>
    %155 = arith.mulf %154, %135 : vector<1x128xf32>
    %156 = arith.subf %131, %155 : vector<1x128xf32>
    %157 = vector.broadcast %125 : vector<32x1xf32> to vector<32x128xf32>
    %158 = vector.broadcast %156 : vector<1x128xf32> to vector<32x128xf32>
    %159 = arith.cmpf ogt, %157, %158 : vector<32x128xf32>
    %cst_30 = arith.constant 2.500000e+00 : f32
    %160 = vector.broadcast %cst_30 : f32 to vector<1x128xf32>
    %161 = arith.mulf %160, %135 : vector<1x128xf32>
    %162 = arith.addf %131, %161 : vector<1x128xf32>
    %163 = vector.broadcast %125 : vector<32x1xf32> to vector<32x128xf32>
    %164 = vector.broadcast %162 : vector<1x128xf32> to vector<32x128xf32>
    %165 = arith.cmpf olt, %163, %164 : vector<32x128xf32>
    %166 = arith.andi %159, %165 : vector<32x128xi1>
    %cst_31 = arith.constant 2.500000e+00 : f32
    %167 = vector.broadcast %cst_31 : f32 to vector<1x128xf32>
    %168 = arith.mulf %167, %136 : vector<1x128xf32>
    %169 = arith.subf %134, %168 : vector<1x128xf32>
    %170 = vector.broadcast %128 : vector<32x1xf32> to vector<32x128xf32>
    %171 = vector.broadcast %169 : vector<1x128xf32> to vector<32x128xf32>
    %172 = arith.cmpf ogt, %170, %171 : vector<32x128xf32>
    %173 = arith.andi %166, %172 : vector<32x128xi1>
    %cst_32 = arith.constant 2.500000e+00 : f32
    %174 = vector.broadcast %cst_32 : f32 to vector<1x128xf32>
    %175 = arith.mulf %174, %136 : vector<1x128xf32>
    %176 = arith.addf %134, %175 : vector<1x128xf32>
    %177 = vector.broadcast %128 : vector<32x1xf32> to vector<32x128xf32>
    %178 = vector.broadcast %176 : vector<1x128xf32> to vector<32x128xf32>
    %179 = arith.cmpf olt, %177, %178 : vector<32x128xf32>
    %180 = arith.andi %173, %179 : vector<32x128xi1>
    %181 = vector.broadcast %14 : vector<1x128xi1> to vector<32x128xi1>
    %182 = arith.andi %180, %181 : vector<32x128xi1>
    %183 = arith.extui %153 : vector<32x128xi1> to vector<32x128xi32>
    %184 = arith.sitofp %183 : vector<32x128xi32> to vector<32x128xf32>
    %cst_33 = arith.constant dense<0.000000e+00> : vector<32xf32>
    %185 = vector.multi_reduction <add>, %184, %cst_33 [1] : vector<32x128xf32> to vector<32xf32>
    %186 = vector.shape_cast %185 : vector<32xf32> to vector<32x1xf32>
    %cst_34 = arith.constant 0.000000e+00 : f32
    %187 = vector.broadcast %cst_34 : f32 to vector<32x1xf32>
    %188 = arith.cmpf ogt, %186, %187 : vector<32x1xf32>
    %189 = arith.extui %182 : vector<32x128xi1> to vector<32x128xi32>
    %190 = arith.sitofp %189 : vector<32x128xi32> to vector<32x128xf32>
    %cst_35 = arith.constant dense<0.000000e+00> : vector<32xf32>
    %191 = vector.multi_reduction <add>, %190, %cst_35 [1] : vector<32x128xf32> to vector<32xf32>
    %192 = vector.shape_cast %191 : vector<32xf32> to vector<32x1xf32>
    %cst_36 = arith.constant 0.000000e+00 : f32
    %193 = vector.broadcast %cst_36 : f32 to vector<32x1xf32>
    %194 = arith.cmpf ogt, %192, %193 : vector<32x1xf32>
    %195 = arith.ori %188, %194 : vector<32x1xi1>
    %196 = arith.andi %153, %182 : vector<32x128xi1>
    %cst_37 = arith.constant 5.000000e+00 : f32
    %197 = vector.broadcast %cst_37 : f32 to vector<32x128xf32>
    %198 = arith.mulf %197, %68 : vector<32x128xf32>
    %cst_38 = arith.constant 2.000000e+00 : f32
    %199 = vector.broadcast %cst_38 : f32 to vector<32x128xf32>
    %200 = arith.mulf %199, %22 : vector<32x128xf32>
    %201 = arith.addf %198, %200 : vector<32x128xf32>
    %cst_39 = arith.constant 2.000000e+00 : f32
    %202 = vector.broadcast %cst_39 : f32 to vector<32x128xf32>
    %203 = arith.mulf %202, %122 : vector<32x128xf32>
    %204 = arith.addf %201, %203 : vector<32x128xf32>
    %205 = arith.extui %196 : vector<32x128xi1> to vector<32x128xi32>
    %206 = arith.sitofp %205 : vector<32x128xi32> to vector<32x128xf32>
    %cst_40 = arith.constant 1.000000e+00 : f32
    %207 = vector.broadcast %cst_40 : f32 to vector<32x128xf32>
    %208 = arith.subf %207, %206 : vector<32x128xf32>
    %cst_41 = arith.constant 1.000000e+02 : f32
    %209 = vector.broadcast %cst_41 : f32 to vector<32x128xf32>
    %210 = arith.mulf %209, %208 : vector<32x128xf32>
    %211 = arith.addf %204, %210 : vector<32x128xf32>
    %212 = arith.extui %195 : vector<32x1xi1> to vector<32x1xi32>
    %213 = arith.sitofp %212 : vector<32x1xi32> to vector<32x1xf32>
    %cst_42 = arith.constant 1.000000e+00 : f32
    %214 = vector.broadcast %cst_42 : f32 to vector<32x1xf32>
    %215 = arith.subf %214, %213 : vector<32x1xf32>
    %cst_43 = arith.constant 1.000000e+04 : f32
    %216 = vector.broadcast %cst_43 : f32 to vector<32x1xf32>
    %217 = arith.mulf %216, %215 : vector<32x1xf32>
    %218 = vector.broadcast %217 : vector<32x1xf32> to vector<32x128xf32>
    %219 = arith.addf %211, %218 : vector<32x128xf32>
    %cst_44 = arith.constant 1.000000e+30 : f32
    %220 = vector.shape_cast %14 : vector<1x128xi1> to vector<1x128xi1>
    %221 = vector.broadcast %220 : vector<1x128xi1> to vector<32x128xi1>
    %222 = vector.broadcast %cst_44 : f32 to vector<32x128xf32>
    %223 = arith.select %221, %219, %222 : vector<32x128xi1>, vector<32x128xf32>
    %c0_45 = arith.constant 0 : index
    %c0_46 = arith.constant 0 : index
    %c0_47 = arith.constant 0 : index
    %224 = vector.load %arg7[%c0_45, %c0_46, %c0_47] : memref<1x32x128xf32, #tpu.memory_space<vmem>>, vector<1x32x128xf32>
    %225 = vector.shape_cast %224 : vector<1x32x128xf32> to vector<32x128xf32>
    %226 = vector.shape_cast %223 : vector<32x128xf32> to vector<1x32x128xf32>
    tpu.vector_store %arg7[%c0_45, %c0_46, %c0_47], %226 {strides = array<i32>} : memref<1x32x128xf32, #tpu.memory_space<vmem>>, vector<1x32x128xf32>,
    %cst_48 = arith.constant 0.000000e+00 : f32
    %227 = vector.shape_cast %14 : vector<1x128xi1> to vector<1x128xi1>
    %228 = vector.broadcast %227 : vector<1x128xi1> to vector<32x128xi1>
    %229 = vector.broadcast %cst_48 : f32 to vector<32x128xf32>
    %230 = arith.select %228, %98, %229 : vector<32x128xi1>, vector<32x128xf32>
    %c0_49 = arith.constant 0 : index
    %c0_50 = arith.constant 0 : index
    %c0_51 = arith.constant 0 : index
    %231 = vector.load %arg8[%c0_49, %c0_50, %c0_51] : memref<1x32x128xf32, #tpu.memory_space<vmem>>, vector<1x32x128xf32>
    %232 = vector.shape_cast %231 : vector<1x32x128xf32> to vector<32x128xf32>
    %233 = vector.shape_cast %230 : vector<32x128xf32> to vector<1x32x128xf32>
    tpu.vector_store %arg8[%c0_49, %c0_50, %c0_51], %233 {strides = array<i32>} : memref<1x32x128xf32, #tpu.memory_space<vmem>>, vector<1x32x128xf32>,
    return
  }
  func.func @transform_0(%arg0: i32) -> (i32, i32, i32) {
    %c0_i32 = arith.constant 0 : i32
    %c0_i32_0 = arith.constant 0 : i32
    %c0_i32_1 = arith.constant 0 : i32
    return %arg0, %c0_i32, %c0_i32_0 : i32, i32, i32
  }
  func.func @transform_1(%arg0: i32) -> (i32, i32, i32) {
    %c0_i32 = arith.constant 0 : i32
    %c0_i32_0 = arith.constant 0 : i32
    %c0_i32_1 = arith.constant 0 : i32
    return %arg0, %c0_i32, %c0_i32_0 : i32, i32, i32
  }
  func.func @transform_2(%arg0: i32) -> (i32, i32, i32) {
    %c0_i32 = arith.constant 0 : i32
    %c0_i32_0 = arith.constant 0 : i32
    %c0_i32_1 = arith.constant 0 : i32
    return %arg0, %c0_i32, %c0_i32_0 : i32, i32, i32
  }
  func.func @transform_3(%arg0: i32) -> (i32, i32, i32) {
    %c0_i32 = arith.constant 0 : i32
    %c0_i32_0 = arith.constant 0 : i32
    %c0_i32_1 = arith.constant 0 : i32
    return %arg0, %c0_i32, %c0_i32_0 : i32, i32, i32
  }
  func.func @transform_4(%arg0: i32) -> (i32, i32, i32) {
    %c0_i32 = arith.constant 0 : i32
    %c0_i32_0 = arith.constant 0 : i32
    %c0_i32_1 = arith.constant 0 : i32
    return %arg0, %c0_i32, %c0_i32_0 : i32, i32, i32
  }
  func.func @transform_5(%arg0: i32) -> (i32, i32, i32) {
    %c0_i32 = arith.constant 0 : i32
    %c0_i32_0 = arith.constant 0 : i32
    %c0_i32_1 = arith.constant 0 : i32
    return %arg0, %c0_i32, %c0_i32_0 : i32, i32, i32
  }
  func.func @transform_6(%arg0: i32) -> (i32, i32, i32) {
    %c0_i32 = arith.constant 0 : i32
    %c0_i32_0 = arith.constant 0 : i32
    %c0_i32_1 = arith.constant 0 : i32
    return %arg0, %c0_i32, %c0_i32_0 : i32, i32, i32
  }
  func.func @transform_7(%arg0: i32) -> (i32, i32, i32) {
    %c0_i32 = arith.constant 0 : i32
    %c0_i32_0 = arith.constant 0 : i32
    %c0_i32_1 = arith.constant 0 : i32
    return %arg0, %c0_i32, %c0_i32_0 : i32, i32, i32
  }
}

</mosaic_0001>

<llo_original>
// kernel: tpu_custom_call.1
$region0: #{tpu_custom_call.1}
  #allocation0 [shape = 'u32[]', space=smem, size = 0x4, offset = 0x4, fixed_abs, tag = 'smem constant byte address 0x4 - core index']
  #allocation1 [shape = 'u32[144,128]{1,0:T(1,128)}', space=vmem, size = 0x12000, scoped, tag = 'internal scratch']
  %s0 = inlined_call_operand.vmem [shape: f32[2,32,16], index: 0, kind: input, shape index: {}]
  %s1 = inlined_call_operand.vmem [shape: f32[2,32,4], index: 1, kind: input, shape index: {}]
  %s2 = inlined_call_operand.vmem [shape: s32[2,1,128], index: 2, kind: input, shape index: {}]
  %s3 = inlined_call_operand.vmem [shape: f32[2,4,128], index: 3, kind: input, shape index: {}]
  %s4 = inlined_call_operand.vmem [shape: f32[2,1,4], index: 4, kind: input, shape index: {}]
  %s5 = inlined_call_operand.vmem [shape: f32[2,4,128], index: 5, kind: input, shape index: {}]
  %s6 = inlined_call_operand.hbm [shape: f32[2,32,128], index: 6, kind: output, shape index: {0}]
  %s7 = inlined_call_operand.hbm [shape: f32[2,32,128], index: 7, kind: output, shape index: {1}]
  %8 = xla_tuple %s6, %s7
  %s9 = sld [smem:[#allocation0]]
  $region65: #{tpu_custom_call.1} parent=0
    _
  %s11 = ssub.s32 1, %s9
  %s12 = scalar_select 0, %s11, %s9
  $region1: #{tpu_custom_call.1} parent=0
    #allocation2 [shape = 'u8[32768]{0}', space=vmem, size = 0x8000, scoped, tag = 'output window, operand 0']
    #allocation3 [shape = 's32[2]{0}', space=sflag, size = 0x8, scoped, tag = 'scoped memory for tpu_custom_call.1']
    #allocation4 [shape = 'u8[32768]{0}', space=vmem, size = 0x8000, scoped, tag = 'output window, operand 1']
    #allocation5 [shape = 's32[2]{0}', space=sflag, size = 0x8, scoped, tag = 'scoped memory for tpu_custom_call.1']
    %13 = vsyncpa [#allocation3], 0
    %s14 = scalar_lea.sflag [#allocation3], 1
    %15 = vsyncpa %s14, 0
    %16 = vsyncpa [#allocation5], 0
    %s17 = scalar_lea.sflag [#allocation5], 1
    %18 = vsyncpa %s17, 0
    loop: start=0, step=1, limit=4
    $region2: #{tpu_custom_call.1} parent=1 // loop_pre_header
      _
    $region3: #{tpu_custom_call.1} parent=1 // loop_header
      %s20 = sphi 0, %s24
      %p21 = scmp.ge.s32.totalorder %s20, 4
      %s30 = sphi 0, %s32
      %s33 = sphi 0, %s30
      %s34 = sphi 0, %s33
      %s50 = sphi 0, %s34
      %s56 = sphi 0, %s58
      %s59 = sphi 0, %s56
      %s60 = sphi 0, %s59
      %s76 = sphi 0, %s60
      %s82 = sphi 0, %s84
      %s85 = sphi 0, %s82
      %s86 = sphi 0, %s85
      %s102 = sphi 0, %s86
      %s108 = sphi 0, %s110
      %s111 = sphi 0, %s108
      %s112 = sphi 0, %s111
      %s128 = sphi 0, %s112
      %s134 = sphi 0, %s136
      %s137 = sphi 0, %s134
      %s138 = sphi 0, %s137
      %s154 = sphi 0, %s138
      %s160 = sphi 0, %s162
      %s163 = sphi 0, %s160
      %s164 = sphi 0, %s163
      %s180 = sphi 0, %s164
      %s186 = sphi 0, %s188
      %s189 = sphi 0, %s186
      %s190 = sphi 0, %s189
      %s206 = sphi 0, %s190
      %s212 = sphi 0, %s214
      %s215 = sphi 0, %s212
      %s216 = sphi 0, %s215
      %s232 = sphi 0, %s216
    $region4: #{tpu_custom_call.1} parent=1 // loop_header_branch
      %23 = sbr.rel (%p21) target = $region8
    $region5: #{tpu_custom_call.1} parent=1 // loop_body
      %s25 = ssub.s32 %s20, 1
      %s26 = ssub.s32 %s20, 2
      %s27 = sadd.s32 %s20, 1
      %s28 = ssub.s32 %s20, %s27
      %p29 = scmp.eq.s32.totalorder %s28, 0
      %s31 = sadd.s32 %s30, 1
      %s32 = scalar_select %p29, %s30, %s31
      %p35 = pneg %p29
      %p36 = scmp.eq.s32.totalorder %s20, 1
      %p37 = por %p35, %p36
      %p38 = scmp.ne.s32.totalorder %s30, %s33
      %p39 = scmp.eq.s32.totalorder %s20, 0
      %p40 = por %p38, %p39
      %p41 = scmp.ne.s32.totalorder %s30, %s33
      %p42 = scmp.eq.s32.totalorder %s25, 1
      %p43 = por %p41, %p42
      %p44 = scmp.ne.s32.totalorder %s33, %s34
      %p45 = scmp.eq.s32.totalorder %s25, 0
      %p46 = por %p44, %p45
      %p47 = scmp.ne.s32.totalorder %s33, %s34
      %p48 = scmp.eq.s32.totalorder %s26, 1
      %p49 = por %p47, %p48
      %p51 = scmp.ne.s32.totalorder %s34, %s50
      %p52 = scmp.eq.s32.totalorder %s26, 0
      %p53 = por %p51, %p52
      %s54 = ssub.s32 %s20, %s27
      %p55 = scmp.eq.s32.totalorder %s54, 0
      %s57 = sadd.s32 %s56, 1
      %s58 = scalar_select %p55, %s56, %s57
      %p61 = pneg %p55
      %p62 = scmp.eq.s32.totalorder %s20, 1
      %p63 = por %p61, %p62
      %p64 = scmp.ne.s32.totalorder %s56, %s59
      %p65 = scmp.eq.s32.totalorder %s20, 0
      %p66 = por %p64, %p65
      %p67 = scmp.ne.s32.totalorder %s56, %s59
      %p68 = scmp.eq.s32.totalorder %s25, 1
      %p69 = por %p67, %p68
      %p70 = scmp.ne.s32.totalorder %s59, %s60
      %p71 = scmp.eq.s32.totalorder %s25, 0
      %p72 = por %p70, %p71
      %p73 = scmp.ne.s32.totalorder %s59, %s60
      %p74 = scmp.eq.s32.totalorder %s26, 1
      %p75 = por %p73, %p74
      %p77 = scmp.ne.s32.totalorder %s60, %s76
      %p78 = scmp.eq.s32.totalorder %s26, 0
      %p79 = por %p77, %p78
      %s80 = ssub.s32 %s20, %s27
      %p81 = scmp.eq.s32.totalorder %s80, 0
      %s83 = sadd.s32 %s82, 1
      %s84 = scalar_select %p81, %s82, %s83
      %p87 = pneg %p81
      %p88 = scmp.eq.s32.totalorder %s20, 1
      %p89 = por %p87, %p88
      %p90 = scmp.ne.s32.totalorder %s82, %s85
      %p91 = scmp.eq.s32.totalorder %s20, 0
      %p92 = por %p90, %p91
      %p93 = scmp.ne.s32.totalorder %s82, %s85
      %p94 = scmp.eq.s32.totalorder %s25, 1
      %p95 = por %p93, %p94
      %p96 = scmp.ne.s32.totalorder %s85, %s86
      %p97 = scmp.eq.s32.totalorder %s25, 0
      %p98 = por %p96, %p97
      %p99 = scmp.ne.s32.totalorder %s85, %s86
      %p100 = scmp.eq.s32.totalorder %s26, 1
      %p101 = por %p99, %p100
      %p103 = scmp.ne.s32.totalorder %s86, %s102
      %p104 = scmp.eq.s32.totalorder %s26, 0
      %p105 = por %p103, %p104
      %s106 = ssub.s32 %s20, %s27
      %p107 = scmp.eq.s32.totalorder %s106, 0
      %s109 = sadd.s32 %s108, 1
      %s110 = scalar_select %p107, %s108, %s109
      %p113 = pneg %p107
      %p114 = scmp.eq.s32.totalorder %s20, 1
      %p115 = por %p113, %p114
      %p116 = scmp.ne.s32.totalorder %s108, %s111
      %p117 = scmp.eq.s32.totalorder %s20, 0
      %p118 = por %p116, %p117
      %p119 = scmp.ne.s32.totalorder %s108, %s111
      %p120 = scmp.eq.s32.totalorder %s25, 1
      %p121 = por %p119, %p120
      %p122 = scmp.ne.s32.totalorder %s111, %s112
      %p123 = scmp.eq.s32.totalorder %s25, 0
      %p124 = por %p122, %p123
      %p125 = scmp.ne.s32.totalorder %s111, %s112
      %p126 = scmp.eq.s32.totalorder %s26, 1
      %p127 = por %p125, %p126
      %p129 = scmp.ne.s32.totalorder %s112, %s128
      %p130 = scmp.eq.s32.totalorder %s26, 0
      %p131 = por %p129, %p130
      %s132 = ssub.s32 %s20, %s27
      %p133 = scmp.eq.s32.totalorder %s132, 0
      %s135 = sadd.s32 %s134, 1
      %s136 = scalar_select %p133, %s134, %s135
      %p139 = pneg %p133
      %p140 = scmp.eq.s32.totalorder %s20, 1
      %p141 = por %p139, %p140
      %p142 = scmp.ne.s32.totalorder %s134, %s137
      %p143 = scmp.eq.s32.totalorder %s20, 0
      %p144 = por %p142, %p143
      %p145 = scmp.ne.s32.totalorder %s134, %s137
      %p146 = scmp.eq.s32.totalorder %s25, 1
      %p147 = por %p145, %p146
      %p148 = scmp.ne.s32.totalorder %s137, %s138
      %p149 = scmp.eq.s32.totalorder %s25, 0
      %p150 = por %p148, %p149
      %p151 = scmp.ne.s32.totalorder %s137, %s138
      %p152 = scmp.eq.s32.totalorder %s26, 1
      %p153 = por %p151, %p152
      %p155 = scmp.ne.s32.totalorder %s138, %s154
      %p156 = scmp.eq.s32.totalorder %s26, 0
      %p157 = por %p155, %p156
      %s158 = ssub.s32 %s20, %s27
      %p159 = scmp.eq.s32.totalorder %s158, 0
      %s161 = sadd.s32 %s160, 1
      %s162 = scalar_select %p159, %s160, %s161
      %p165 = pneg %p159
      %p166 = scmp.eq.s32.totalorder %s20, 1
      %p167 = por %p165, %p166
      %p168 = scmp.ne.s32.totalorder %s160, %s163
      %p169 = scmp.eq.s32.totalorder %s20, 0
      %p170 = por %p168, %p169
      %p171 = scmp.ne.s32.totalorder %s160, %s163
      %p172 = scmp.eq.s32.totalorder %s25, 1
      %p173 = por %p171, %p172
      %p174 = scmp.ne.s32.totalorder %s163, %s164
      %p175 = scmp.eq.s32.totalorder %s25, 0
      %p176 = por %p174, %p175
      %p177 = scmp.ne.s32.totalorder %s163, %s164
      %p178 = scmp.eq.s32.totalorder %s26, 1
      %p179 = por %p177, %p178
      %p181 = scmp.ne.s32.totalorder %s164, %s180
      %p182 = scmp.eq.s32.totalorder %s26, 0
      %p183 = por %p181, %p182
      %s184 = ssub.s32 %s20, %s27
      %p185 = scmp.eq.s32.totalorder %s184, 0
      %s187 = sadd.s32 %s186, 1
      %s188 = scalar_select %p185, %s186, %s187
      %p191 = pneg %p185
      %p192 = scmp.eq.s32.totalorder %s20, 1
      %p193 = por %p191, %p192
      %p194 = scmp.ne.s32.totalorder %s186, %s189
      %p195 = scmp.eq.s32.totalorder %s20, 0
      %p196 = por %p194, %p195
      %p197 = scmp.ne.s32.totalorder %s186, %s189
      %p198 = scmp.eq.s32.totalorder %s25, 1
      %p199 = por %p197, %p198
      %p200 = scmp.ne.s32.totalorder %s189, %s190
      %p201 = scmp.eq.s32.totalorder %s25, 0
      %p202 = por %p200, %p201
      %p203 = scmp.ne.s32.totalorder %s189, %s190
      %p204 = scmp.eq.s32.totalorder %s26, 1
      %p205 = por %p203, %p204
      %p207 = scmp.ne.s32.totalorder %s190, %s206
      %p208 = scmp.eq.s32.totalorder %s26, 0
      %p209 = por %p207, %p208
      %s210 = ssub.s32 %s20, %s27
      %p211 = scmp.eq.s32.totalorder %s210, 0
      %s213 = sadd.s32 %s212, 1
      %s214 = scalar_select %p211, %s212, %s213
      %p217 = pneg %p211
      %p218 = scmp.eq.s32.totalorder %s20, 1
      %p219 = por %p217, %p218
      %p220 = scmp.ne.s32.totalorder %s212, %s215
      %p221 = scmp.eq.s32.totalorder %s20, 0
      %p222 = por %p220, %p221
      %p223 = scmp.ne.s32.totalorder %s212, %s215
      %p224 = scmp.eq.s32.totalorder %s25, 1
      %p225 = por %p223, %p224
      %p226 = scmp.ne.s32.totalorder %s215, %s216
      %p227 = scmp.eq.s32.totalorder %s25, 0
      %p228 = por %p226, %p227
      %p229 = scmp.ne.s32.totalorder %s215, %s216
      %p230 = scmp.eq.s32.totalorder %s26, 1
      %p231 = por %p229, %p230
      %p233 = scmp.ne.s32.totalorder %s216, %s232
      %p234 = scmp.eq.s32.totalorder %s26, 0
      %p235 = por %p233, %p234
      %p236 = scmp.le.s32.totalorder 1, %s20
      %p237 = scmp.lt.s32.totalorder %s20, 3
      %p238 = pnand %p236, %p237
      %p239 = pneg %p238
      // Predicated region
      $region9: #{tpu_custom_call.1} parent=5 // pred_check
        _
      $region10: #{tpu_custom_call.1} parent=5 // pred_check_branch
        %241 = sbr.rel (%p238) target = $region12
      $region11: #{tpu_custom_call.1} parent=5 // pred_region
        %s242 = ssub.s32 %s20, 1
      $region12: #{tpu_custom_call.1} parent=5 // pred_fallthru
        _
      %p243 = scmp.lt.s32.totalorder %s20, 2
      // Predicated region
      $region13: #{tpu_custom_call.1} parent=5 // pred_check
        %p244 = pneg %p243
      $region14: #{tpu_custom_call.1} parent=5 // pred_check_branch
        %246 = sbr.rel (%p244) target = $region16
      $region15: #{tpu_custom_call.1} parent=5 // pred_region
        // Predicated region
        $region17: #{tpu_custom_call.1} parent=15 // pred_check
          %p247 = pneg %p40
        $region18: #{tpu_custom_call.1} parent=15 // pred_check_branch
          %249 = sbr.rel (%p247) target = $region20
        $region19: #{tpu_custom_call.1} parent=15 // pred_region
          %p250 = scmp.lt.s32.totalorder %s20, 1
          %s251 = scalar_select %p250, %s20, 1
          %s252 = smul.addr %s251, 4
          %s253 = smul.addr %s252, 8
          %s254 = scalar_lea.vmem %s0, %s253
        $region20: #{tpu_custom_call.1} parent=15 // pred_fallthru
          _
        // Predicated region
        $region21: #{tpu_custom_call.1} parent=15 // pred_check
          %p255 = pneg %p66
        $region22: #{tpu_custom_call.1} parent=15 // pred_check_branch
          %257 = sbr.rel (%p255) target = $region24
        $region23: #{tpu_custom_call.1} parent=15 // pred_region
          %p258 = scmp.lt.s32.totalorder %s20, 1
          %s259 = scalar_select %p258, %s20, 1
          %s260 = smul.addr %s259, 4
          %s261 = smul.addr %s260, 8
          %s262 = scalar_lea.vmem %s1, %s261
        $region24: #{tpu_custom_call.1} parent=15 // pred_fallthru
          _
        // Predicated region
        $region25: #{tpu_custom_call.1} parent=15 // pred_check
          %p263 = pneg %p92
        $region26: #{tpu_custom_call.1} parent=15 // pred_check_branch
          %265 = sbr.rel (%p263) target = $region28
        $region27: #{tpu_custom_call.1} parent=15 // pred_region
          %p266 = scmp.lt.s32.totalorder %s20, 1
          %s267 = scalar_select %p266, %s20, 1
          %s268 = scalar_lea.vmem %s2, %s267
        $region28: #{tpu_custom_call.1} parent=15 // pred_fallthru
          _
        // Predicated region
        $region29: #{tpu_custom_call.1} parent=15 // pred_check
          %p269 = pneg %p118
        $region30: #{tpu_custom_call.1} parent=15 // pred_check_branch
          %271 = sbr.rel (%p269) target = $region32
        $region31: #{tpu_custom_call.1} parent=15 // pred_region
          %p272 = scmp.lt.s32.totalorder %s20, 1
          %s273 = scalar_select %p272, %s20, 1
          %s274 = smul.addr %s273, 4
          %s275 = scalar_lea.vmem %s3, %s274
        $region32: #{tpu_custom_call.1} parent=15 // pred_fallthru
          _
        // Predicated region
        $region33: #{tpu_custom_call.1} parent=15 // pred_check
          %p276 = pneg %p144
        $region34: #{tpu_custom_call.1} parent=15 // pred_check_branch
          %278 = sbr.rel (%p276) target = $region36
        $region35: #{tpu_custom_call.1} parent=15 // pred_region
          %p279 = scmp.lt.s32.totalorder %s20, 1
          %s280 = scalar_select %p279, %s20, 1
          %s281 = scalar_lea.vmem %s4, %s280
        $region36: #{tpu_custom_call.1} parent=15 // pred_fallthru
          _
        // Predicated region
        $region37: #{tpu_custom_call.1} parent=15 // pred_check
          %p282 = pneg %p170
        $region38: #{tpu_custom_call.1} parent=15 // pred_check_branch
          %284 = sbr.rel (%p282) target = $region40
        $region39: #{tpu_custom_call.1} parent=15 // pred_region
          %p285 = scmp.lt.s32.totalorder %s20, 1
          %s286 = scalar_select %p285, %s20, 1
          %s287 = smul.addr %s286, 4
          %s288 = scalar_lea.vmem %s5, %s287
        $region40: #{tpu_custom_call.1} parent=15 // pred_fallthru
          _
      $region16: #{tpu_custom_call.1} parent=5 // pred_fallthru
        _
      %p289 = scmp.le.s32.totalorder 1, %s20
      %p290 = scmp.lt.s32.totalorder %s20, 3
      %p291 = pnand %p289, %p290
      %p292 = pneg %p291
      // Predicated region
      $region41: #{tpu_custom_call.1} parent=5 // pred_check
        _
      $region42: #{tpu_custom_call.1} parent=5 // pred_check_branch
        %294 = sbr.rel (%p291) target = $region44
      $region43: #{tpu_custom_call.1} parent=5 // pred_region
        %s295 = ssub.s32 %s20, 1
        %p296 = scmp.lt.s32.totalorder %s25, 1
        %s297 = scalar_select %p296, %s25, 1
        %s298 = smul.addr %s297, 4
        %s299 = smul.addr %s298, 8
        %s300 = scalar_lea.vmem %s0, %s299
        %p301 = pneg %p46
        %p302 = pneg %p43
        %p303 = scmp.lt.s32.totalorder %s25, 1
        %s304 = scalar_select %p303, %s25, 1
        %s305 = smul.addr %s304, 4
        %s306 = smul.addr %s305, 8
        %s307 = scalar_lea.vmem %s1, %s306
        %p308 = pneg %p72
        %p309 = pneg %p69
        %p310 = scmp.lt.s32.totalorder %s25, 1
        %s311 = scalar_select %p310, %s25, 1
        %s312 = scalar_lea.vmem %s2, %s311
        %p313 = pneg %p98
        %p314 = pneg %p95
        %p315 = scmp.lt.s32.totalorder %s25, 1
        %s316 = scalar_select %p315, %s25, 1
        %s317 = smul.addr %s316, 4
        %s318 = scalar_lea.vmem %s3, %s317
        %p319 = pneg %p124
        %p320 = pneg %p121
        %p321 = scmp.lt.s32.totalorder %s25, 1
        %s322 = scalar_select %p321, %s25, 1
        %s323 = scalar_lea.vmem %s4, %s322
        %p324 = pneg %p150
        %p325 = pneg %p147
        %p326 = scmp.lt.s32.totalorder %s25, 1
        %s327 = scalar_select %p326, %s25, 1
        %s328 = smul.addr %s327, 4
        %s329 = scalar_lea.vmem %s5, %s328
        %p330 = pneg %p176
        %p331 = pneg %p173
        %p332 = pneg %p202
        %p333 = pneg %p199
        %s334 = sand.u32 %s189, 1
        %s335 = scalar_lea.sflag [#allocation3], %s334
        %s336 = sand.u32 %s189, 1
        %s337 = smul.addr %s336, 32
        %s338 = scalar_lea.vmem [#allocation2], %s337
        %p339 = pneg %p228
        %p340 = pneg %p225
        %s341 = sand.u32 %s215, 1
        %s342 = scalar_lea.sflag [#allocation5], %s341
        %s343 = sand.u32 %s215, 1
        %s344 = smul.addr %s343, 32
        %s345 = scalar_lea.vmem [#allocation4], %s344
        %p346 = scmp.lt.s32.totalorder %s25, 1
        %s347 = scalar_select %p346, %s25, 1
        %s348 = smul.addr %s347, 4
        %s349 = smul.addr %s348, 8
        %s350 = scalar_lea.vmem %s0, %s349
        %p351 = scmp.lt.s32.totalorder %s25, 1
        %s352 = scalar_select %p351, %s25, 1
        %s353 = smul.addr %s352, 4
        %s354 = smul.addr %s353, 8
        %s355 = scalar_lea.vmem %s1, %s354
        %p356 = scmp.lt.s32.totalorder %s25, 1
        %s357 = scalar_select %p356, %s25, 1
        %s358 = scalar_lea.vmem %s2, %s357
        %p359 = scmp.lt.s32.totalorder %s25, 1
        %s360 = scalar_select %p359, %s25, 1
        %s361 = smul.addr %s360, 4
        %s362 = scalar_lea.vmem %s3, %s361
        %p363 = scmp.lt.s32.totalorder %s25, 1
        %s364 = scalar_select %p363, %s25, 1
        %s365 = scalar_lea.vmem %s4, %s364
        %p366 = scmp.lt.s32.totalorder %s25, 1
        %s367 = scalar_select %p366, %s25, 1
        %s368 = smul.addr %s367, 4
        %s369 = scalar_lea.vmem %s5, %s368
        %v370 = vld [vmem:[%s350] sm:$0xff]
        %v371 = vld [vmem:[%s350 + $0x8] sm:$0xff]
        %v372 = vld [vmem:[%s350 + $0x10] sm:$0xff]
        %v373 = vld [vmem:[%s350 + $0x18] sm:$0xff]
        %vm374 = vcmask 130048
        %v375 = vsel %vm374, %v370, -inf
        %376 = vmax.xlane.f32.xlu0 %v375
        %v377 = vpop.xlane.xlu0 %376
        %v378 = vsel %vm374, %v371, -inf
        %379 = vmax.xlane.f32.xlu0 %v378
        %v380 = vpop.xlane.xlu0 %379
        %v381 = vsel %vm374, %v372, -inf
        %382 = vmax.xlane.f32.xlu0 %v381
        %v383 = vpop.xlane.xlu0 %382
        %v384 = vsel %vm374, %v373, -inf
        %385 = vmax.xlane.f32.xlu0 %v384
        %v386 = vpop.xlane.xlu0 %385
        %v387 = vsub.f32 %v370, %v377
        %v388 = vsub.f32 %v371, %v380
        %v389 = vsub.f32 %v372, %v383
        %v390 = vsub.f32 %v373, %v386
        %v391 = vmul.f32 %v387, 1.442695
        %v392 = vpow.pop %v391
        %v393 = vmul.f32 %v388, 1.442695
        %v394 = vpow.pop %v393
        %v395 = vmul.f32 %v389, 1.442695
        %v396 = vpow.pop %v395
        %v397 = vmul.f32 %v390, 1.442695
        %v398 = vpow.pop %v397
        %v399 = vsel %vm374, %v392, 0.0
        %400 = vadd.xlane.f32.xlu0 %v399
        %v401 = vpop.xlane.xlu0 %400
        %v402 = vsel %vm374, %v394, 0.0
        %403 = vadd.xlane.f32.xlu0 %v402
        %v404 = vpop.xlane.xlu0 %403
        %v405 = vsel %vm374, %v396, 0.0
        %406 = vadd.xlane.f32.xlu0 %v405
        %v407 = vpop.xlane.xlu0 %406
        %v408 = vsel %vm374, %v398, 0.0
        %409 = vadd.xlane.f32.xlu0 %v408
        %v410 = vpop.xlane.xlu0 %409
        %v411 = vrcp.pop %v401
        %v412 = vmul.f32 %v392, %v411
        %v413 = vrcp.pop %v404
        %v414 = vmul.f32 %v394, %v413
        %v415 = vrcp.pop %v407
        %v416 = vmul.f32 %v396, %v415
        %v417 = vrcp.pop %v410
        %v418 = vmul.f32 %v398, %v417
        %v419 = vld [vmem:[%s358] sm:$0x1]
        %vm420 = vcmp.ge.s32.totalorder %v419, 0
        %v421 = vlaneseq
        %v422 = vshrl.u32 %v421, 7
        %v423 = vadd.s32 %v422, 8
        %v424 = vlaneseq
        %v425 = vshrl.u32 %v424, 7
        %v426 = vsub.s32 0, %v425
        %v427 = vrot.slane %v419, %v426
        %vm428 = vcmp.eq.s32.totalorder %v422, %v427
        %vm429 = vcmp.eq.s32.totalorder %v423, %v427
        %v430 = vsel %vm428, 1, 0
        %v431 = vsel %vm429, 1, 0
        %v432 = vcvt.s32.f32 %v430
        %v433 = vcvt.s32.f32 %v431
        %v435 = vsel %vm374, %v412, 0
        %v438 = vsel %vm374, %v414, 0
        %v441 = vsel %vm374, %v416, 0
        %v444 = vsel %vm374, %v418, 0
        %446 = vmatprep.subr.mxu0 0.0
        %447 = vmatpush1.msra.mxu0 %v432
        %448 = vmatprep.subr.mxu0 0.0
        %449 = vmatpush1.msra.mxu0 %v433
        %450 = vmatprep.subr.mxu0 0.0
        %451 = vmatpush1.msra.mxu0 0.0
        %452 = vmatprep.subr.mxu0 0.0
        %453 = vmatpush1.msra.mxu0 0.0
        %454 = vmatprep.subr.mxu0 0.0
        %455 = vmatpush1.msra.mxu0 0.0
        %456 = vmatprep.subr.mxu0 0.0
        %457 = vmatpush1.msra.mxu0 0.0
        %458 = vmatprep.subr.mxu0 0.0
        %459 = vmatpush1.msra.mxu0 0.0
        %460 = vmatprep.subr.mxu0 0.0
        %461 = vmatpush1.msra.mxu0 0.0
        %462 = vmatprep.subr.mxu0 0.0
        %463 = vmatpush1.msra.mxu0 0.0
        %464 = vmatprep.subr.mxu0 0.0
        %465 = vmatpush1.msra.mxu0 0.0
        %466 = vmatprep.subr.mxu0 0.0
        %467 = vmatpush1.msra.mxu0 0.0
        %468 = vmatprep.subr.mxu0 0.0
        %469 = vmatpush1.msra.mxu0 0.0
        %470 = vmatprep.subr.mxu0 0.0
        %471 = vmatpush1.msra.mxu0 0.0
        %472 = vmatprep.subr.mxu0 0.0
        %473 = vmatpush1.msra.mxu0 0.0
        %474 = vmatprep.subr.mxu0 0.0
        %475 = vmatpush1.msra.mxu0 0.0
        %476 = vmatprep.subr.mxu0 0.0
        %477 = vmatpush1.msra.mxu0 0.0
        %478 = vmatprep.subr.mxu0 0.0
        %479 = vmatpush1.msra.mxu0 0.0
        %480 = vmatprep.subr.mxu0 0.0
        %481 = vmatpush1.msra.mxu0 0.0
        %482 = vmatprep.subr.mxu0 0.0
        %483 = vmatpush1.msra.mxu0 0.0
        %484 = vmatprep.subr.mxu0 0.0
        %485 = vmatpush1.msra.mxu0 0.0
        %486 = vmatprep.subr.mxu0 0.0
        %487 = vmatpush1.msra.mxu0 0.0
        %488 = vmatprep.subr.mxu0 0.0
        %489 = vmatpush1.msra.mxu0 0.0
        %490 = vmatprep.subr.mxu0 0.0
        %491 = vmatpush1.msra.mxu0 0.0
        %492 = vmatprep.subr.mxu0 0.0
        %493 = vmatpush1.msra.mxu0 0.0
        %494 = vmatprep.subr.mxu0 0.0
        %495 = vmatpush1.msra.mxu0 0.0
        %496 = vmatprep.subr.mxu0 0.0
        %497 = vmatpush1.msra.mxu0 0.0
        %498 = vmatprep.subr.mxu0 0.0
        %499 = vmatpush1.msra.mxu0 0.0
        %500 = vmatprep.subr.mxu0 0.0
        %501 = vmatpush1.msra.mxu0 0.0
        %502 = vmatprep.subr.mxu0 0.0
        %503 = vmatpush1.msra.mxu0 0.0
        %504 = vmatprep.subr.mxu0 0.0
        %505 = vmatpush1.msra.mxu0 0.0
        %506 = vmatprep.subr.mxu0 0.0
        %507 = vmatpush1.msra.mxu0 0.0
        %508 = vmatprep.subr.mxu0 0.0
        %509 = vmatpush1.msra.mxu0 0.0
        %510 = vmatprep.mubr.f32.mxu0 0.0
        %511 = vmatmul.mubr.f32.gmra.mrb[0].mxu0 %v435
        %v512 = vpop.f32.mrb[0].mxu0
        %v513 = vadd.f32 0.0, %v512
        %v514 = vpop.f32.mrb[0].mxu0
        %515 = vmatprep.mubr.f32.mxu0 0.0
        %516 = vmatmul.mubr.f32.gmra.mrb[0].mxu0 %v438
        %v517 = vpop.f32.mrb[0].mxu0
        %v518 = vadd.f32 0.0, %v517
        %v519 = vpop.f32.mrb[0].mxu0
        %520 = vmatprep.mubr.f32.mxu0 0.0
        %521 = vmatmul.mubr.f32.gmra.mrb[0].mxu0 %v441
        %v522 = vpop.f32.mrb[0].mxu0
        %v523 = vadd.f32 0.0, %v522
        %v524 = vpop.f32.mrb[0].mxu0
        %525 = vmatprep.mubr.f32.mxu0 0.0
        %526 = vmatmul.mubr.f32.gmra.mrb[0].mxu0 %v444
        %v527 = vpop.f32.mrb[0].mxu0
        %v528 = vadd.f32 0.0, %v527
        %v529 = vpop.f32.mrb[0].mxu0
        %530 = vdwg.mxu0
        %v531 = vsub.f32 0.0, %v513
        %v532 = vsub.f32 0.0, %v518
        %v533 = vsub.f32 0.0, %v523
        %v534 = vsub.f32 0.0, %v528
        %v535 = vld [vmem:[%s355] sm:$0xff]
        %v536 = vld [vmem:[%s355 + $0x8] sm:$0xff]
        %v537 = vld [vmem:[%s355 + $0x10] sm:$0xff]
        %v538 = vld [vmem:[%s355 + $0x18] sm:$0xff]
        %v539 = vld [vmem:[%s362] sm:$0xf]
        %v540 = vld [vmem:[%s365] sm:$0x1]
        %v542 = vlaneseq
        %v543 = vshrl.u32 %v542, 7
        %v544 = vsub.s32 0, %v543
        %v545 = vrot.slane %v540, %v544
        %v547 = vrcp.pop %v545
        %v548 = vmul.f32 %v535, %v547
        %v549 = vmul.f32 %v536, %v547
        %v550 = vmul.f32 %v537, %v547
        %v551 = vmul.f32 %v538, %v547
        %v552 = vld [vmem:[%s369] sm:$0xf]
        %v553 = vrcp.pop %v552
        %v554 = vmul.f32 %v539, %v553
        %556 = vset.pattern.permute.xlu0 0
        %557 = vperm.xlu0 %556, %v548
        %v558 = vpop.permute.xlu0 %557
        %561 = vset.pattern.permute.xlu0 0
        %562 = vperm.xlu0 %561, %v549
        %v563 = vpop.permute.xlu0 %562
        %566 = vset.pattern.permute.xlu0 0
        %567 = vperm.xlu0 %566, %v550
        %v568 = vpop.permute.xlu0 %567
        %571 = vset.pattern.permute.xlu0 0
        %572 = vperm.xlu0 %571, %v551
        %v573 = vpop.permute.xlu0 %572
        %v575 = vlaneseq
        %v576 = vshrl.u32 %v575, 7
        %v577 = vsub.s32 0, %v576
        %v578 = vrot.slane %v554, %v577
        %v579 = vsub.f32 %v558, %v578
        %v580 = vsub.f32 %v563, %v578
        %v581 = vsub.f32 %v568, %v578
        %v582 = vsub.f32 %v573, %v578
        %v583 = vand.u32 2147483647, %v579
        %v584 = vand.u32 2147483647, %v580
        %v585 = vand.u32 2147483647, %v581
        %v586 = vand.u32 2147483647, %v582
        %587 = vset.pattern.permute.xlu0 1
        %588 = vperm.xlu0 %587, %v548
        %v589 = vpop.permute.xlu0 %588
        %591 = vset.pattern.permute.xlu0 1
        %592 = vperm.xlu0 %591, %v549
        %v593 = vpop.permute.xlu0 %592
        %595 = vset.pattern.permute.xlu0 1
        %596 = vperm.xlu0 %595, %v550
        %v597 = vpop.permute.xlu0 %596
        %599 = vset.pattern.permute.xlu0 1
        %600 = vperm.xlu0 %599, %v551
        %v601 = vpop.permute.xlu0 %600
        %v603 = vlaneseq
        %v604 = vshrl.u32 %v603, 7
        %v605 = vsub.s32 1, %v604
        %v606 = vrot.slane %v554, %v605
        %v607 = vsub.f32 %v589, %v606
        %v608 = vsub.f32 %v593, %v606
        %v609 = vsub.f32 %v597, %v606
        %v610 = vsub.f32 %v601, %v606
        %v611 = vand.u32 2147483647, %v607
        %v612 = vand.u32 2147483647, %v608
        %v613 = vand.u32 2147483647, %v609
        %v614 = vand.u32 2147483647, %v610
        %v615 = vadd.f32 %v583, %v611
        %v616 = vadd.f32 %v584, %v612
        %v617 = vadd.f32 %v585, %v613
        %v618 = vadd.f32 %v586, %v614
        %619 = vset.pattern.permute.xlu0 2
        %620 = vperm.xlu0 %619, %v548
        %v621 = vpop.permute.xlu0 %620
        %623 = vset.pattern.permute.xlu0 2
        %624 = vperm.xlu0 %623, %v549
        %v625 = vpop.permute.xlu0 %624
        %627 = vset.pattern.permute.xlu0 2
        %628 = vperm.xlu0 %627, %v550
        %v629 = vpop.permute.xlu0 %628
        %631 = vset.pattern.permute.xlu0 2
        %632 = vperm.xlu0 %631, %v551
        %v633 = vpop.permute.xlu0 %632
        %v635 = vlaneseq
        %v636 = vshrl.u32 %v635, 7
        %v637 = vsub.s32 2, %v636
        %v638 = vrot.slane %v554, %v637
        %v639 = vsub.f32 %v621, %v638
        %v640 = vsub.f32 %v625, %v638
        %v641 = vsub.f32 %v629, %v638
        %v642 = vsub.f32 %v633, %v638
        %v643 = vand.u32 2147483647, %v639
        %v644 = vand.u32 2147483647, %v640
        %v645 = vand.u32 2147483647, %v641
        %v646 = vand.u32 2147483647, %v642
        %v647 = vadd.f32 %v615, %v643
        %v648 = vadd.f32 %v616, %v644
        %v649 = vadd.f32 %v617, %v645
        %v650 = vadd.f32 %v618, %v646
        %651 = vset.pattern.permute.xlu0 3
        %652 = vperm.xlu0 %651, %v548
        %v653 = vpop.permute.xlu0 %652
        %655 = vset.pattern.permute.xlu0 3
        %656 = vperm.xlu0 %655, %v549
        %v657 = vpop.permute.xlu0 %656
        %659 = vset.pattern.permute.xlu0 3
        %660 = vperm.xlu0 %659, %v550
        %v661 = vpop.permute.xlu0 %660
        %663 = vset.pattern.permute.xlu0 3
        %664 = vperm.xlu0 %663, %v551
        %v665 = vpop.permute.xlu0 %664
        %v667 = vlaneseq
        %v668 = vshrl.u32 %v667, 7
        %v669 = vsub.s32 3, %v668
        %v670 = vrot.slane %v554, %v669
        %v671 = vsub.f32 %v653, %v670
        %v672 = vsub.f32 %v657, %v670
        %v673 = vsub.f32 %v661, %v670
        %v674 = vsub.f32 %v665, %v670
        %v675 = vand.u32 2147483647, %v671
        %v676 = vand.u32 2147483647, %v672
        %v677 = vand.u32 2147483647, %v673
        %v678 = vand.u32 2147483647, %v674
        %v679 = vadd.f32 %v647, %v675
        %v680 = vadd.f32 %v648, %v676
        %v681 = vadd.f32 %v649, %v677
        %v682 = vadd.f32 %v650, %v678
        %687 = vrot.lane.b32.xlu0 %v535, 2
        %v688 = vpop.permute.xlu0 %687
        %689 = vrot.lane.b32.xlu0 %v536, 2
        %v690 = vpop.permute.xlu0 %689
        %691 = vrot.lane.b32.xlu0 %v537, 2
        %v692 = vpop.permute.xlu0 %691
        %693 = vrot.lane.b32.xlu0 %v538, 2
        %v694 = vpop.permute.xlu0 %693
        %v699 = vsub.f32 %v535, %v688
        %v700 = vsub.f32 %v536, %v690
        %v701 = vsub.f32 %v537, %v692
        %v702 = vsub.f32 %v538, %v694
        %707 = vrot.lane.b32.xlu0 %v699, 127
        %v708 = vpop.permute.xlu0 %707
        %709 = vrot.lane.b32.xlu0 %v700, 127
        %v710 = vpop.permute.xlu0 %709
        %711 = vrot.lane.b32.xlu0 %v701, 127
        %v712 = vpop.permute.xlu0 %711
        %713 = vrot.lane.b32.xlu0 %v702, 127
        %v714 = vpop.permute.xlu0 %713
        %v719 = vmul.f32 %v699, %v708
        %v720 = vmul.f32 %v700, %v710
        %v721 = vmul.f32 %v701, %v712
        %v722 = vmul.f32 %v702, %v714
        %v724 = vrot.slane %v539, 6
        %v726 = vsub.f32 %v539, %v724
        %v728 = vrot.slane %v726, 1
        %v730 = vmul.f32 %v726, %v728
        %731 = vset.pattern.permute.xlu0 2
        %732 = vperm.xlu0 %731, %v535
        %v733 = vpop.permute.xlu0 %732
        %735 = vset.pattern.permute.xlu0 2
        %736 = vperm.xlu0 %735, %v536
        %v737 = vpop.permute.xlu0 %736
        %739 = vset.pattern.permute.xlu0 2
        %740 = vperm.xlu0 %739, %v537
        %v741 = vpop.permute.xlu0 %740
        %743 = vset.pattern.permute.xlu0 2
        %744 = vperm.xlu0 %743, %v538
        %v745 = vpop.permute.xlu0 %744
        %v747 = vlaneseq
        %v748 = vshrl.u32 %v747, 7
        %v749 = vsub.s32 2, %v748
        %v750 = vrot.slane %v539, %v749
        %v751 = vmin.f32 %v733, %v750
        %v752 = vmin.f32 %v737, %v750
        %v753 = vmin.f32 %v741, %v750
        %v754 = vmin.f32 %v745, %v750
        %755 = vset.pattern.permute.xlu0 0
        %756 = vperm.xlu0 %755, %v535
        %v757 = vpop.permute.xlu0 %756
        %759 = vset.pattern.permute.xlu0 0
        %760 = vperm.xlu0 %759, %v536
        %v761 = vpop.permute.xlu0 %760
        %763 = vset.pattern.permute.xlu0 0
        %764 = vperm.xlu0 %763, %v537
        %v765 = vpop.permute.xlu0 %764
        %767 = vset.pattern.permute.xlu0 0
        %768 = vperm.xlu0 %767, %v538
        %v769 = vpop.permute.xlu0 %768
        %v771 = vlaneseq
        %v772 = vshrl.u32 %v771, 7
        %v773 = vsub.s32 0, %v772
        %v774 = vrot.slane %v539, %v773
        %v775 = vmax.f32 %v757, %v774
        %v776 = vmax.f32 %v761, %v774
        %v777 = vmax.f32 %v765, %v774
        %v778 = vmax.f32 %v769, %v774
        %v779 = vsub.f32 %v751, %v775
        %v780 = vsub.f32 %v752, %v776
        %v781 = vsub.f32 %v753, %v777
        %v782 = vsub.f32 %v754, %v778
        %v783 = vmax.f32 %v779, 0.0
        %v784 = vmax.f32 %v780, 0.0
        %v785 = vmax.f32 %v781, 0.0
        %v786 = vmax.f32 %v782, 0.0
        %787 = vset.pattern.permute.xlu0 3
        %788 = vperm.xlu0 %787, %v535
        %v789 = vpop.permute.xlu0 %788
        %791 = vset.pattern.permute.xlu0 3
        %792 = vperm.xlu0 %791, %v536
        %v793 = vpop.permute.xlu0 %792
        %795 = vset.pattern.permute.xlu0 3
        %796 = vperm.xlu0 %795, %v537
        %v797 = vpop.permute.xlu0 %796
        %799 = vset.pattern.permute.xlu0 3
        %800 = vperm.xlu0 %799, %v538
        %v801 = vpop.permute.xlu0 %800
        %v803 = vlaneseq
        %v804 = vshrl.u32 %v803, 7
        %v805 = vsub.s32 3, %v804
        %v806 = vrot.slane %v539, %v805
        %v807 = vmin.f32 %v789, %v806
        %v808 = vmin.f32 %v793, %v806
        %v809 = vmin.f32 %v797, %v806
        %v810 = vmin.f32 %v801, %v806
        %811 = vset.pattern.permute.xlu0 1
        %812 = vperm.xlu0 %811, %v535
        %v813 = vpop.permute.xlu0 %812
        %815 = vset.pattern.permute.xlu0 1
        %816 = vperm.xlu0 %815, %v536
        %v817 = vpop.permute.xlu0 %816
        %819 = vset.pattern.permute.xlu0 1
        %820 = vperm.xlu0 %819, %v537
        %v821 = vpop.permute.xlu0 %820
        %823 = vset.pattern.permute.xlu0 1
        %824 = vperm.xlu0 %823, %v538
        %v825 = vpop.permute.xlu0 %824
        %v827 = vlaneseq
        %v828 = vshrl.u32 %v827, 7
        %v829 = vsub.s32 1, %v828
        %v830 = vrot.slane %v539, %v829
        %v831 = vmax.f32 %v813, %v830
        %v832 = vmax.f32 %v817, %v830
        %v833 = vmax.f32 %v821, %v830
        %v834 = vmax.f32 %v825, %v830
        %v835 = vsub.f32 %v807, %v831
        %v836 = vsub.f32 %v808, %v832
        %v837 = vsub.f32 %v809, %v833
        %v838 = vsub.f32 %v810, %v834
        %v839 = vmax.f32 %v835, 0.0
        %v840 = vmax.f32 %v836, 0.0
        %v841 = vmax.f32 %v837, 0.0
        %v842 = vmax.f32 %v838, 0.0
        %v843 = vmul.f32 %v783, %v839
        %v844 = vmul.f32 %v784, %v840
        %v845 = vmul.f32 %v785, %v841
        %v846 = vmul.f32 %v786, %v842
        %848 = vset.pattern.permute.xlu0 2
        %849 = vperm.xlu0 %848, %v719
        %v850 = vpop.permute.xlu0 %849
        %853 = vset.pattern.permute.xlu0 2
        %854 = vperm.xlu0 %853, %v720
        %v855 = vpop.permute.xlu0 %854
        %858 = vset.pattern.permute.xlu0 2
        %859 = vperm.xlu0 %858, %v721
        %v860 = vpop.permute.xlu0 %859
        %863 = vset.pattern.permute.xlu0 2
        %864 = vperm.xlu0 %863, %v722
        %v865 = vpop.permute.xlu0 %864
        %v867 = vlaneseq
        %v868 = vshrl.u32 %v867, 7
        %v869 = vsub.s32 2, %v868
        %v870 = vrot.slane %v730, %v869
        %v871 = vadd.f32 %v850, %v870
        %v872 = vadd.f32 %v855, %v870
        %v873 = vadd.f32 %v860, %v870
        %v874 = vadd.f32 %v865, %v870
        %v875 = vsub.f32 %v871, %v843
        %v876 = vsub.f32 %v872, %v844
        %v877 = vsub.f32 %v873, %v845
        %v878 = vsub.f32 %v874, %v846
        %v879 = vrcp.pop %v875
        %v880 = vmul.f32 %v843, %v879
        %v881 = vrcp.pop %v876
        %v882 = vmul.f32 %v844, %v881
        %v883 = vrcp.pop %v877
        %v884 = vmul.f32 %v845, %v883
        %v885 = vrcp.pop %v878
        %v886 = vmul.f32 %v846, %v885
        %v887 = vmax.f32 %v733, %v750
        %v888 = vmax.f32 %v737, %v750
        %v889 = vmax.f32 %v741, %v750
        %v890 = vmax.f32 %v745, %v750
        %v891 = vmin.f32 %v757, %v774
        %v892 = vmin.f32 %v761, %v774
        %v893 = vmin.f32 %v765, %v774
        %v894 = vmin.f32 %v769, %v774
        %v895 = vsub.f32 %v887, %v891
        %v896 = vsub.f32 %v888, %v892
        %v897 = vsub.f32 %v889, %v893
        %v898 = vsub.f32 %v890, %v894
        %v899 = vmax.f32 %v895, 0.0
        %v900 = vmax.f32 %v896, 0.0
        %v901 = vmax.f32 %v897, 0.0
        %v902 = vmax.f32 %v898, 0.0
        %v903 = vmax.f32 %v789, %v806
        %v904 = vmax.f32 %v793, %v806
        %v905 = vmax.f32 %v797, %v806
        %v906 = vmax.f32 %v801, %v806
        %v907 = vmin.f32 %v813, %v830
        %v908 = vmin.f32 %v817, %v830
        %v909 = vmin.f32 %v821, %v830
        %v910 = vmin.f32 %v825, %v830
        %v911 = vsub.f32 %v903, %v907
        %v912 = vsub.f32 %v904, %v908
        %v913 = vsub.f32 %v905, %v909
        %v914 = vsub.f32 %v906, %v910
        %v915 = vmax.f32 %v911, 0.0
        %v916 = vmax.f32 %v912, 0.0
        %v917 = vmax.f32 %v913, 0.0
        %v918 = vmax.f32 %v914, 0.0
        %v919 = vmul.f32 %v899, %v915
        %v920 = vmul.f32 %v900, %v916
        %v921 = vmul.f32 %v901, %v917
        %v922 = vmul.f32 %v902, %v918
        %v923 = vsub.f32 %v919, %v875
        %v924 = vsub.f32 %v920, %v876
        %v925 = vsub.f32 %v921, %v877
        %v926 = vsub.f32 %v922, %v878
        %v927 = vrcp.pop %v919
        %v928 = vmul.f32 %v923, %v927
        %v929 = vrcp.pop %v920
        %v930 = vmul.f32 %v924, %v929
        %v931 = vrcp.pop %v921
        %v932 = vmul.f32 %v925, %v931
        %v933 = vrcp.pop %v922
        %v934 = vmul.f32 %v926, %v933
        %v935 = vsub.f32 %v880, %v928
        %v936 = vsub.f32 %v882, %v930
        %v937 = vsub.f32 %v884, %v932
        %v938 = vsub.f32 %v886, %v934
        %v939 = vsub.f32 0.0, %v935
        %v940 = vsub.f32 0.0, %v936
        %v941 = vsub.f32 0.0, %v937
        %v942 = vsub.f32 0.0, %v938
        %943 = vrot.lane.b32.xlu0 %v535, 126
        %v944 = vpop.permute.xlu0 %943
        %945 = vrot.lane.b32.xlu0 %v536, 126
        %v946 = vpop.permute.xlu0 %945
        %947 = vrot.lane.b32.xlu0 %v537, 126
        %v948 = vpop.permute.xlu0 %947
        %949 = vrot.lane.b32.xlu0 %v538, 126
        %v950 = vpop.permute.xlu0 %949
        %v955 = vadd.f32 %v535, %v944
        %v956 = vadd.f32 %v536, %v946
        %v957 = vadd.f32 %v537, %v948
        %v958 = vadd.f32 %v538, %v950
        %v959 = vmul.f32 %v955, 0.5
        %v960 = vmul.f32 %v956, 0.5
        %v961 = vmul.f32 %v957, 0.5
        %v962 = vmul.f32 %v958, 0.5
        %v963 = vrot.slane %v539, 2
        %v965 = vadd.f32 %v539, %v963
        %v966 = vmul.f32 %v965, 0.5
        %968 = vset.pattern.permute.xlu0 0
        %969 = vperm.xlu0 %968, %v959
        %v970 = vpop.permute.xlu0 %969
        %973 = vset.pattern.permute.xlu0 0
        %974 = vperm.xlu0 %973, %v960
        %v975 = vpop.permute.xlu0 %974
        %978 = vset.pattern.permute.xlu0 0
        %979 = vperm.xlu0 %978, %v961
        %v980 = vpop.permute.xlu0 %979
        %983 = vset.pattern.permute.xlu0 0
        %984 = vperm.xlu0 %983, %v962
        %v985 = vpop.permute.xlu0 %984
        %vm987 = vcmp.gt.f32.partialorder %v970, %v774
        %vm988 = vcmp.gt.f32.partialorder %v975, %v774
        %vm989 = vcmp.gt.f32.partialorder %v980, %v774
        %vm990 = vcmp.gt.f32.partialorder %v985, %v774
        %vm991 = vcmp.lt.f32.partialorder %v970, %v750
        %vm992 = vcmp.lt.f32.partialorder %v975, %v750
        %vm993 = vcmp.lt.f32.partialorder %v980, %v750
        %vm994 = vcmp.lt.f32.partialorder %v985, %v750
        %vm995 = vmand %vm987, %vm991
        %vm996 = vmand %vm988, %vm992
        %vm997 = vmand %vm989, %vm993
        %vm998 = vmand %vm990, %vm994
        %999 = vset.pattern.permute.xlu0 1
        %1000 = vperm.xlu0 %999, %v959
        %v1001 = vpop.permute.xlu0 %1000
        %1003 = vset.pattern.permute.xlu0 1
        %1004 = vperm.xlu0 %1003, %v960
        %v1005 = vpop.permute.xlu0 %1004
        %1007 = vset.pattern.permute.xlu0 1
        %1008 = vperm.xlu0 %1007, %v961
        %v1009 = vpop.permute.xlu0 %1008
        %1011 = vset.pattern.permute.xlu0 1
        %1012 = vperm.xlu0 %1011, %v962
        %v1013 = vpop.permute.xlu0 %1012
        %vm1015 = vcmp.gt.f32.partialorder %v1001, %v830
        %vm1016 = vcmp.gt.f32.partialorder %v1005, %v830
        %vm1017 = vcmp.gt.f32.partialorder %v1009, %v830
        %vm1018 = vcmp.gt.f32.partialorder %v1013, %v830
        %vm1019 = vmand %vm995, %vm1015
        %vm1020 = vmand %vm996, %vm1016
        %vm1021 = vmand %vm997, %vm1017
        %vm1022 = vmand %vm998, %vm1018
        %vm1023 = vcmp.lt.f32.partialorder %v1001, %v806
        %vm1024 = vcmp.lt.f32.partialorder %v1005, %v806
        %vm1025 = vcmp.lt.f32.partialorder %v1009, %v806
        %vm1026 = vcmp.lt.f32.partialorder %v1013, %v806
        %vm1027 = vmand %vm1019, %vm1023
        %vm1028 = vmand %vm1020, %vm1024
        %vm1029 = vmand %vm1021, %vm1025
        %vm1030 = vmand %vm1022, %vm1026
        %v1031 = vsel %vm420, 1, 0
        %v1032 = vlaneseq
        %v1033 = vshrl.u32 %v1032, 7
        %v1034 = vsub.s32 0, %v1033
        %v1035 = vrot.slane %v1031, %v1034
        %vm1036 = vcmp.eq.s32.totalorder %v1035, 1
        %vm1037 = vmand %vm1027, %vm1036
        %vm1038 = vmand %vm1028, %vm1036
        %vm1039 = vmand %vm1029, %vm1036
        %vm1040 = vmand %vm1030, %vm1036
        %v1041 = vmul.f32 %v726, 2.5
        %v1043 = vrot.slane %v1041, 2
        %v1045 = vsub.f32 %v966, %v1043
        %v1046 = vlaneseq
        %v1047 = vshrl.u32 %v1046, 7
        %v1048 = vsub.s32 0, %v1047
        %v1049 = vrot.slane %v1045, %v1048
        %vm1050 = vcmp.gt.f32.partialorder %v970, %v1049
        %vm1051 = vcmp.gt.f32.partialorder %v975, %v1049
        %vm1052 = vcmp.gt.f32.partialorder %v980, %v1049
        %vm1053 = vcmp.gt.f32.partialorder %v985, %v1049
        %v1054 = vadd.f32 %v966, %v1043
        %v1055 = vlaneseq
        %v1056 = vshrl.u32 %v1055, 7
        %v1057 = vsub.s32 0, %v1056
        %v1058 = vrot.slane %v1054, %v1057
        %vm1059 = vcmp.lt.f32.partialorder %v970, %v1058
        %vm1060 = vcmp.lt.f32.partialorder %v975, %v1058
        %vm1061 = vcmp.lt.f32.partialorder %v980, %v1058
        %vm1062 = vcmp.lt.f32.partialorder %v985, %v1058
        %vm1063 = vmand %vm1050, %vm1059
        %vm1064 = vmand %vm1051, %vm1060
        %vm1065 = vmand %vm1052, %vm1061
        %vm1066 = vmand %vm1053, %vm1062
        %v1067 = vlaneseq
        %v1068 = vshrl.u32 %v1067, 7
        %v1069 = vsub.s32 1, %v1068
        %v1070 = vrot.slane %v1045, %v1069
        %vm1071 = vcmp.gt.f32.partialorder %v1001, %v1070
        %vm1072 = vcmp.gt.f32.partialorder %v1005, %v1070
        %vm1073 = vcmp.gt.f32.partialorder %v1009, %v1070
        %vm1074 = vcmp.gt.f32.partialorder %v1013, %v1070
        %vm1075 = vmand %vm1063, %vm1071
        %vm1076 = vmand %vm1064, %vm1072
        %vm1077 = vmand %vm1065, %vm1073
        %vm1078 = vmand %vm1066, %vm1074
        %v1079 = vlaneseq
        %v1080 = vshrl.u32 %v1079, 7
        %v1081 = vsub.s32 1, %v1080
        %v1082 = vrot.slane %v1054, %v1081
        %vm1083 = vcmp.lt.f32.partialorder %v1001, %v1082
        %vm1084 = vcmp.lt.f32.partialorder %v1005, %v1082
        %vm1085 = vcmp.lt.f32.partialorder %v1009, %v1082
        %vm1086 = vcmp.lt.f32.partialorder %v1013, %v1082
        %vm1087 = vmand %vm1075, %vm1083
        %vm1088 = vmand %vm1076, %vm1084
        %vm1089 = vmand %vm1077, %vm1085
        %vm1090 = vmand %vm1078, %vm1086
        %vm1091 = vmand %vm1087, %vm1036
        %vm1092 = vmand %vm1088, %vm1036
        %vm1093 = vmand %vm1089, %vm1036
        %vm1094 = vmand %vm1090, %vm1036
        %v1095 = vsel %vm1037, 1, 0
        %v1096 = vsel %vm1038, 1, 0
        %v1097 = vsel %vm1039, 1, 0
        %v1098 = vsel %vm1040, 1, 0
        %v1099 = vcvt.s32.f32 %v1095
        %v1100 = vcvt.s32.f32 %v1096
        %v1101 = vcvt.s32.f32 %v1097
        %v1102 = vcvt.s32.f32 %v1098
        %1103 = vadd.xlane.f32.xlu0 %v1099
        %v1104 = vpop.xlane.xlu0 %1103
        %1105 = vadd.xlane.f32.xlu0 %v1100
        %v1106 = vpop.xlane.xlu0 %1105
        %1107 = vadd.xlane.f32.xlu0 %v1101
        %v1108 = vpop.xlane.xlu0 %1107
        %1109 = vadd.xlane.f32.xlu0 %v1102
        %v1110 = vpop.xlane.xlu0 %1109
        %vm1111 = vcmp.gt.f32.partialorder %v1104, 0.0
        %vm1112 = vcmp.gt.f32.partialorder %v1106, 0.0
        %vm1113 = vcmp.gt.f32.partialorder %v1108, 0.0
        %vm1114 = vcmp.gt.f32.partialorder %v1110, 0.0
        %v1115 = vsel %vm1091, 1, 0
        %v1116 = vsel %vm1092, 1, 0
        %v1117 = vsel %vm1093, 1, 0
        %v1118 = vsel %vm1094, 1, 0
        %v1119 = vcvt.s32.f32 %v1115
        %v1120 = vcvt.s32.f32 %v1116
        %v1121 = vcvt.s32.f32 %v1117
        %v1122 = vcvt.s32.f32 %v1118
        %1123 = vadd.xlane.f32.xlu0 %v1119
        %v1124 = vpop.xlane.xlu0 %1123
        %1125 = vadd.xlane.f32.xlu0 %v1120
        %v1126 = vpop.xlane.xlu0 %1125
        %1127 = vadd.xlane.f32.xlu0 %v1121
        %v1128 = vpop.xlane.xlu0 %1127
        %1129 = vadd.xlane.f32.xlu0 %v1122
        %v1130 = vpop.xlane.xlu0 %1129
        %vm1131 = vcmp.gt.f32.partialorder %v1124, 0.0
        %vm1132 = vcmp.gt.f32.partialorder %v1126, 0.0
        %vm1133 = vcmp.gt.f32.partialorder %v1128, 0.0
        %vm1134 = vcmp.gt.f32.partialorder %v1130, 0.0
        %vm1135 = vmor %vm1111, %vm1131
        %vm1136 = vmor %vm1112, %vm1132
        %vm1137 = vmor %vm1113, %vm1133
        %vm1138 = vmor %vm1114, %vm1134
        %vm1139 = vmand %vm1037, %vm1091
        %vm1140 = vmand %vm1038, %vm1092
        %vm1141 = vmand %vm1039, %vm1093
        %vm1142 = vmand %vm1040, %vm1094
        %v1143 = vmul.f32 %v679, 5.0
        %v1144 = vmul.f32 %v680, 5.0
        %v1145 = vmul.f32 %v681, 5.0
        %v1146 = vmul.f32 %v682, 5.0
        %v1147 = vmul.f32 %v531, 2.0
        %v1148 = vmul.f32 %v532, 2.0
        %v1149 = vmul.f32 %v533, 2.0
        %v1150 = vmul.f32 %v534, 2.0
        %v1151 = vadd.f32 %v1143, %v1147
        %v1152 = vadd.f32 %v1144, %v1148
        %v1153 = vadd.f32 %v1145, %v1149
        %v1154 = vadd.f32 %v1146, %v1150
        %v1155 = vmul.f32 %v939, 2.0
        %v1156 = vmul.f32 %v940, 2.0
        %v1157 = vmul.f32 %v941, 2.0
        %v1158 = vmul.f32 %v942, 2.0
        %v1159 = vadd.f32 %v1151, %v1155
        %v1160 = vadd.f32 %v1152, %v1156
        %v1161 = vadd.f32 %v1153, %v1157
        %v1162 = vadd.f32 %v1154, %v1158
        %v1163 = vsel %vm1139, 1, 0
        %v1164 = vsel %vm1140, 1, 0
        %v1165 = vsel %vm1141, 1, 0
        %v1166 = vsel %vm1142, 1, 0
        %v1167 = vcvt.s32.f32 %v1163
        %v1168 = vcvt.s32.f32 %v1164
        %v1169 = vcvt.s32.f32 %v1165
        %v1170 = vcvt.s32.f32 %v1166
        %v1171 = vsub.f32 1.0, %v1167
        %v1172 = vsub.f32 1.0, %v1168
        %v1173 = vsub.f32 1.0, %v1169
        %v1174 = vsub.f32 1.0, %v1170
        %v1175 = vmul.f32 %v1171, 100.0
        %v1176 = vmul.f32 %v1172, 100.0
        %v1177 = vmul.f32 %v1173, 100.0
        %v1178 = vmul.f32 %v1174, 100.0
        %v1179 = vadd.f32 %v1159, %v1175
        %v1180 = vadd.f32 %v1160, %v1176
        %v1181 = vadd.f32 %v1161, %v1177
        %v1182 = vadd.f32 %v1162, %v1178
        %v1183 = vsel %vm1135, 1, 0
        %v1184 = vsel %vm1136, 1, 0
        %v1185 = vsel %vm1137, 1, 0
        %v1186 = vsel %vm1138, 1, 0
        %v1187 = vcvt.s32.f32 %v1183
        %v1188 = vcvt.s32.f32 %v1184
        %v1189 = vcvt.s32.f32 %v1185
        %v1190 = vcvt.s32.f32 %v1186
        %v1191 = vsub.f32 1.0, %v1187
        %v1192 = vsub.f32 1.0, %v1188
        %v1193 = vsub.f32 1.0, %v1189
        %v1194 = vsub.f32 1.0, %v1190
        %v1195 = vmul.f32 %v1191, 10000.0
        %v1196 = vmul.f32 %v1192, 10000.0
        %v1197 = vmul.f32 %v1193, 10000.0
        %v1198 = vmul.f32 %v1194, 10000.0
        %v1199 = vadd.f32 %v1179, %v1195
        %v1200 = vadd.f32 %v1180, %v1196
        %v1201 = vadd.f32 %v1181, %v1197
        %v1202 = vadd.f32 %v1182, %v1198
        %v1203 = vsel %vm1036, %v1199, 1e+30
        %v1204 = vsel %vm1036, %v1200, 1e+30
        %v1205 = vsel %vm1036, %v1201, 1e+30
        %v1206 = vsel %vm1036, %v1202, 1e+30
        %1207 = vst [vmem:[%s338] sm:$0xff] %v1203
        %1208 = vst [vmem:[%s338 + $0x8] sm:$0xff] %v1204
        %1209 = vst [vmem:[%s338 + $0x10] sm:$0xff] %v1205
        %1210 = vst [vmem:[%s338 + $0x18] sm:$0xff] %v1206
        %v1211 = vsel %vm1036, %v880, 0.0
        %v1212 = vsel %vm1036, %v882, 0.0
        %v1213 = vsel %vm1036, %v884, 0.0
        %v1214 = vsel %vm1036, %v886, 0.0
        %1215 = vst [vmem:[%s345] sm:$0xff] %v1211
        %1216 = vst [vmem:[%s345 + $0x8] sm:$0xff] %v1212
        %1217 = vst [vmem:[%s345 + $0x10] sm:$0xff] %v1213
        %1218 = vst [vmem:[%s345 + $0x18] sm:$0xff] %v1214
        %s1219 = sand.u32 %s189, 1
        %s1220 = scalar_lea.sflag [#allocation3], %s1219
        %s1221 = sand.u32 %s189, 1
        %s1222 = smul.addr %s1221, 32
        %s1223 = scalar_lea.vmem [#allocation2], %s1222
        %s1224 = sand.u32 %s215, 1
        %s1225 = scalar_lea.sflag [#allocation5], %s1224
        %s1226 = sand.u32 %s215, 1
        %s1227 = smul.addr %s1226, 32
        %s1228 = scalar_lea.vmem [#allocation4], %s1227
        // Predicated region
        $region45: #{tpu_custom_call.1} parent=43 // pred_check
          %p1229 = pneg %p199
        $region46: #{tpu_custom_call.1} parent=43 // pred_check_branch
          %1231 = sbr.rel (%p1229) target = $region48
        $region47: #{tpu_custom_call.1} parent=43 // pred_region
          %s1233 = ssub.s32 512, 512
          %1234 = vsyncadd %s1220, %s1233
          %s1235 = smul.addr %s25, 4
          %s1236 = smul.addr %s1235, 128
          %s1237 = scalar_lea.hbm %s6, %s1236
          %s1238 = sshll.u32 %s1223, 4
          %s1239 = int_to_ptr.vmem [resolvable:$true] %s1238
          %1244 = dma.vmem_to_hbm [thread:$0]  %s1239, 512, %s1237, %s1220, 128, 128, 8
        $region48: #{tpu_custom_call.1} parent=43 // pred_fallthru
          _
        // Predicated region
        $region49: #{tpu_custom_call.1} parent=43 // pred_check
          %p1245 = pneg %p225
        $region50: #{tpu_custom_call.1} parent=43 // pred_check_branch
          %1247 = sbr.rel (%p1245) target = $region52
        $region51: #{tpu_custom_call.1} parent=43 // pred_region
          %s1249 = ssub.s32 512, 512
          %1250 = vsyncadd %s1225, %s1249
          %s1251 = smul.addr %s25, 4
          %s1252 = smul.addr %s1251, 128
          %s1253 = scalar_lea.hbm %s7, %s1252
          %s1254 = sshll.u32 %s1228, 4
          %s1255 = int_to_ptr.vmem [resolvable:$true] %s1254
          %1260 = dma.vmem_to_hbm [thread:$0]  %s1255, 512, %s1253, %s1225, 128, 128, 8
        $region52: #{tpu_custom_call.1} parent=43 // pred_fallthru
          _
      $region44: #{tpu_custom_call.1} parent=5 // pred_fallthru
        _
      %p1261 = scmp.le.s32.totalorder 2, %s20
      // Predicated region
      $region53: #{tpu_custom_call.1} parent=5 // pred_check
        %p1262 = pneg %p1261
      $region54: #{tpu_custom_call.1} parent=5 // pred_check_branch
        %1264 = sbr.rel (%p1262) target = $region56
      $region55: #{tpu_custom_call.1} parent=5 // pred_region
        %s1265 = ssub.s32 %s20, 2
        // Predicated region
        $region57: #{tpu_custom_call.1} parent=55 // pred_check
          %p1266 = pneg %p205
        $region58: #{tpu_custom_call.1} parent=55 // pred_check_branch
          %1268 = sbr.rel (%p1266) target = $region60
        $region59: #{tpu_custom_call.1} parent=55 // pred_region
          %s1269 = sand.u32 %s190, 1
          %s1270 = scalar_lea.sflag [#allocation3], %s1269
          %s1271 = sand.u32 %s190, 1
          %s1272 = smul.addr %s1271, 32
          %s1273 = scalar_lea.vmem [#allocation2], %s1272
          %1274 = dma.done %s1270, 512
        $region60: #{tpu_custom_call.1} parent=55 // pred_fallthru
          _
        // Predicated region
        $region61: #{tpu_custom_call.1} parent=55 // pred_check
          %p1275 = pneg %p231
        $region62: #{tpu_custom_call.1} parent=55 // pred_check_branch
          %1277 = sbr.rel (%p1275) target = $region64
        $region63: #{tpu_custom_call.1} parent=55 // pred_region
          %s1278 = sand.u32 %s216, 1
          %s1279 = scalar_lea.sflag [#allocation5], %s1278
          %s1280 = sand.u32 %s216, 1
          %s1281 = smul.addr %s1280, 32
          %s1282 = scalar_lea.vmem [#allocation4], %s1281
          %1283 = dma.done %s1279, 512
        $region64: #{tpu_custom_call.1} parent=55 // pred_fallthru
          _
      $region56: #{tpu_custom_call.1} parent=5 // pred_fallthru
        _
    $region6: #{tpu_custom_call.1} parent=1 // loop_footer
      %s24 = sadd.s32 1, %s20
    $region7: #{tpu_custom_call.1} parent=1 // loop_footer_branch
      %19 = sbr.rel target = $region3
    $region8: #{tpu_custom_call.1} parent=1 // loop_exit
      _
    %1284 = vsyncpa [#allocation3], 1
    %s1285 = scalar_lea.sflag [#allocation3], 1
    %1286 = vsyncpa %s1285, 1
    %1287 = vsyncpa [#allocation5], 1
    %s1288 = scalar_lea.sflag [#allocation5], 1
    %1289 = vsyncpa %s1288, 1

</llo_original>
